<compile_context>
chip_gen: v6e
topology: v6e:2x2x1
jax: 0.10.0
libtpu: 0.0.40
codegen_flags: <defaults>
</compile_context>

<pallas_src>
import math

import jax
import jax.numpy as jnp
from jax.experimental import pallas as pl
from jax.experimental.pallas import tpu as pltpu  # noqa: F401

# --- model config (small, consistent with the module's forward) ---
D_MODEL = 32
NHEAD = 4
DIM_FF = 64
SEQ = 8
BATCH = 2
HEAD_DIM = D_MODEL // NHEAD
EPS = 1e-5

SB = SEQ * BATCH  # total rows processed in the single kernel step


def encoder_layer_kernel(x_ref, pos_ref,
                         w_qk_ref, w_v_ref, w_out_ref, w_ff1_ref, w_ff2_ref,
                         b_qk_ref, b_v_ref, b_out_ref, b_ff1_ref, b_ff2_ref,
                         n1w_ref, n1b_ref, n2w_ref, n2b_ref,
                         o_ref):
    D, HD = D_MODEL, HEAD_DIM

    x = x_ref[...]                      # (SB, D)  src rows
    qk_in = x + pos_ref[...]            # q = k = src + pos ; v uses src

    # fused q/k projection (one (SB,D)@(D,2D) matmul), separate v projection
    qk = jnp.dot(qk_in, w_qk_ref[...],
                 preferred_element_type=jnp.float32) + b_qk_ref[...]   # (SB, 2D)
    v = jnp.dot(x, w_v_ref[...],
                preferred_element_type=jnp.float32) + b_v_ref[...]     # (SB, D)

    # Rows are ordered (seq-major, batch-minor): row r belongs to batch r % BATCH.
    # Mask cross-batch score entries so the softmax never mixes batches; this lets
    # all B*S rows share one score matmul per head (no per-batch loop / slicing).
    row_b = jax.lax.broadcasted_iota(jnp.int32, (SB, SB), 0) % BATCH
    col_b = jax.lax.broadcasted_iota(jnp.int32, (SB, SB), 1) % BATCH
    same_batch = row_b == col_b

    scale = 1.0 / math.sqrt(HD)
    heads = []
    for h in range(NHEAD):              # static unroll, NHEAD = 4
        lo = h * HD
        qh = qk[:, lo:lo + HD] * scale
        kh = qk[:, D + lo:D + lo + HD]
        vh = v[:, lo:lo + HD]
        s = jax.lax.dot_general(qh, kh, (((1,), (1,)), ((), ())),
                                preferred_element_type=jnp.float32)    # (SB, SB)
        s = jnp.where(same_batch, s, -1e30)
        s = s - jnp.max(s, axis=-1, keepdims=True)
        p = jnp.exp(s)
        p = p / jnp.sum(p, axis=-1, keepdims=True)
        heads.append(jnp.dot(p, vh, preferred_element_type=jnp.float32))
    ctx = jnp.concatenate(heads, axis=-1)            # (SB, D), heads contiguous

    # single fused output projection
    attn = jnp.dot(ctx, w_out_ref[...],
                   preferred_element_type=jnp.float32) + b_out_ref[...]

    # residual + LayerNorm1   (dropout1 = identity)
    y = x + attn
    mu = jnp.mean(y, axis=-1, keepdims=True)
    var = jnp.mean((y - mu) ** 2, axis=-1, keepdims=True)
    y = (y - mu) * jax.lax.rsqrt(var + EPS) * n1w_ref[...] + n1b_ref[...]

    # feed-forward (relu), dropout = identity
    h1 = jnp.dot(y, w_ff1_ref[...],
                 preferred_element_type=jnp.float32) + b_ff1_ref[...]
    h1 = jnp.maximum(h1, 0.0)
    ff = jnp.dot(h1, w_ff2_ref[...],
                 preferred_element_type=jnp.float32) + b_ff2_ref[...]

    # residual + LayerNorm2   (dropout2 = identity)
    z = y + ff
    mu = jnp.mean(z, axis=-1, keepdims=True)
    var = jnp.mean((z - mu) ** 2, axis=-1, keepdims=True)
    o_ref[...] = (z - mu) * jax.lax.rsqrt(var + EPS) * n2w_ref[...] + n2b_ref[...]


def transformer_encoder_layer(src_sbd, pos_sbd, params):
    """src_sbd, pos_sbd: (S, B, D) float32 (PyTorch seq-first convention)."""
    (in_w, in_b, out_w, out_b, l1_w, l1_b, l2_w, l2_b,
     n1_w, n1_b, n2_w, n2_b) = params
    S, B, D = src_sbd.shape

    # Pre-transpose all weights once at trace time; the kernel never does .T.
    w_qk = in_w[:2 * D].T          # (D, 2D)  fused q|k projection
    w_v = in_w[2 * D:].T           # (D, D)   v projection
    w_out = out_w.T                # (D, D)   attention out-proj
    w_ff1 = l1_w.T                 # (D, FF)  linear1
    w_ff2 = l2_w.T                 # (FF, D)  linear2
    b_qk = in_b[:, :2 * D]         # (1, 2D)
    b_v = in_b[:, 2 * D:]          # (1, D)

    # (S, B, D) -> (S*B, D): contiguous reshape, NO transpose / HBM round trip.
    x2d = src_sbd.reshape(S * B, D)
    p2d = pos_sbd.reshape(S * B, D)

    def full_block(shape):
        return pl.BlockSpec(shape, lambda *_: (0,) * len(shape))

    args = (x2d, p2d,
            w_qk, w_v, w_out, w_ff1, w_ff2,
            b_qk, b_v, out_b, l1_b, l2_b,
            n1_w, n1_b, n2_w, n2_b)

    out2d = pl.pallas_call(
        encoder_layer_kernel,
        out_shape=jax.ShapeDtypeStruct((S * B, D), jnp.float32),
        in_specs=[full_block(a.shape) for a in args],
        out_specs=full_block((S * B, D)),
    )(*args)

    return out2d.reshape(S, B, D)


def reference(src, pos, params):
    (in_w, in_b, out_w, out_b, l1_w, l1_b, l2_w, l2_b,
     n1_w, n1_b, n2_w, n2_b) = params
    D = D_MODEL
    S, B, _ = src.shape
    x = src
    qk = x + pos
    q = qk @ in_w[:D].T + in_b[0, :D]
    k = qk @ in_w[D:2 * D].T + in_b[0, D:2 * D]
    v = x @ in_w[2 * D:].T + in_b[0, 2 * D:]

    def split(t):
        return t.reshape(S, B, NHEAD, HEAD_DIM).transpose(1, 2, 0, 3)  # (B,H,S,hd)

    qh, kh, vh = split(q), split(k), split(v)
    scores = jnp.einsum('bhqd,bhkd->bhqk', qh, kh) / jnp.sqrt(HEAD_DIM)
    p = jax.nn.softmax(scores, axis=-1)
    o = jnp.einsum('bhqk,bhkd->bhqd', p, vh)
    o = o.transpose(2, 0, 1, 3).reshape(S, B, D)
    attn = o @ out_w.T + out_b[0]
    x = x + attn

    def ln(t, g, b):
        mu = t.mean(-1, keepdims=True)
        var = ((t - mu) ** 2).mean(-1, keepdims=True)
        return (t - mu) / jnp.sqrt(var + EPS) * g[0] + b[0]

    x = ln(x, n1_w, n1_b)
    ff = jnp.maximum(x @ l1_w.T + l1_b[0], 0.0) @ l2_w.T + l2_b[0]
    x = x + ff
    return ln(x, n2_w, n2_b)


def init_params(key):
    ks = jax.random.split(key, 8)
    D = D_MODEL
    in_w = 0.05 * jax.random.normal(ks[0], (3 * D, D), jnp.float32)
    in_b = 0.05 * jax.random.normal(ks[1], (1, 3 * D), jnp.float32)
    out_w = 0.05 * jax.random.normal(ks[2], (D, D), jnp.float32)
    out_b = 0.05 * jax.random.normal(ks[3], (1, D), jnp.float32)
    l1_w = 0.05 * jax.random.normal(ks[4], (DIM_FF, D), jnp.float32)
    l1_b = 0.05 * jax.random.normal(ks[5], (1, DIM_FF), jnp.float32)
    l2_w = 0.05 * jax.random.normal(ks[6], (D, DIM_FF), jnp.float32)
    l2_b = 0.05 * jax.random.normal(ks[7], (1, D), jnp.float32)
    n1_w = jnp.ones((1, D), jnp.float32)
    n1_b = jnp.zeros((1, D), jnp.float32)
    n2_w = jnp.ones((1, D), jnp.float32)
    n2_b = jnp.zeros((1, D), jnp.float32)
    return (in_w, in_b, out_w, out_b, l1_w, l1_b, l2_w, l2_b,
            n1_w, n1_b, n2_w, n2_b)


if __name__ == "__main__":
    key = jax.random.PRNGKey(0)
    k_src, k_pos, k_par = jax.random.split(key, 3)
    src = jax.random.normal(k_src, (SEQ, BATCH, D_MODEL), jnp.float32)
    pos = jax.random.normal(k_pos, (SEQ, BATCH, D_MODEL), jnp.float32)
    params = init_params(k_par)

    out = transformer_encoder_layer(src, pos, params)
    out = jax.block_until_ready(out)

    ref = reference(src, pos, params)
    assert out.shape == (SEQ, BATCH, D_MODEL)
    assert jnp.allclose(out, ref, atol=2e-3, rtol=2e-3), "mismatch vs reference"
    print("KERNEL_OK")
</pallas_src>

<mosaic_0001>
module attributes {stable_mosaic.version = 11 : i64} {
  func.func @encoder_layer_kernel(%arg0: memref<16x32xf32, #tpu.memory_space<vmem>>, %arg1: memref<16x32xf32, #tpu.memory_space<vmem>>, %arg2: memref<32x64xf32, #tpu.memory_space<vmem>>, %arg3: memref<32x32xf32, #tpu.memory_space<vmem>>, %arg4: memref<32x32xf32, #tpu.memory_space<vmem>>, %arg5: memref<32x64xf32, #tpu.memory_space<vmem>>, %arg6: memref<64x32xf32, #tpu.memory_space<vmem>>, %arg7: memref<1x64xf32, #tpu.memory_space<vmem>>, %arg8: memref<1x32xf32, #tpu.memory_space<vmem>>, %arg9: memref<1x32xf32, #tpu.memory_space<vmem>>, %arg10: memref<1x64xf32, #tpu.memory_space<vmem>>, %arg11: memref<1x32xf32, #tpu.memory_space<vmem>>, %arg12: memref<1x32xf32, #tpu.memory_space<vmem>>, %arg13: memref<1x32xf32, #tpu.memory_space<vmem>>, %arg14: memref<1x32xf32, #tpu.memory_space<vmem>>, %arg15: memref<1x32xf32, #tpu.memory_space<vmem>>, %arg16: memref<16x32xf32, #tpu.memory_space<vmem>>) attributes {dimension_semantics = [], scalar_prefetch = 0 : i64, scratch_operands = 0 : i64, tpu.core_type = #tpu.core_type<tc>} {
    %c0 = arith.constant 0 : index
    %c0_0 = arith.constant 0 : index
    %0 = vector.load %arg0[%c0, %c0_0] : memref<16x32xf32, #tpu.memory_space<vmem>>, vector<16x32xf32>
    %c0_1 = arith.constant 0 : index
    %c0_2 = arith.constant 0 : index
    %1 = vector.load %arg1[%c0_1, %c0_2] : memref<16x32xf32, #tpu.memory_space<vmem>>, vector<16x32xf32>
    %2 = arith.addf %0, %1 : vector<16x32xf32>
    %c0_3 = arith.constant 0 : index
    %c0_4 = arith.constant 0 : index
    %3 = vector.load %arg2[%c0_3, %c0_4] : memref<32x64xf32, #tpu.memory_space<vmem>>, vector<32x64xf32>
    %cst = arith.constant dense<0.000000e+00> : vector<16x64xf32>
    %4 = tpu.matmul %2, %3, %cst {dimension_numbers = #tpu.dot_dimension_numbers<[1], [0], [0], [1], [0, 0, 1, 1], [], []>} : vector<16x32xf32>, vector<32x64xf32>, vector<16x64xf32> -> vector<16x64xf32>
    %c0_5 = arith.constant 0 : index
    %c0_6 = arith.constant 0 : index
    %5 = vector.load %arg7[%c0_5, %c0_6] : memref<1x64xf32, #tpu.memory_space<vmem>>, vector<1x64xf32>
    %6 = vector.broadcast %5 : vector<1x64xf32> to vector<16x64xf32>
    %7 = arith.addf %4, %6 : vector<16x64xf32>
    %c0_7 = arith.constant 0 : index
    %c0_8 = arith.constant 0 : index
    %8 = vector.load %arg3[%c0_7, %c0_8] : memref<32x32xf32, #tpu.memory_space<vmem>>, vector<32x32xf32>
    %cst_9 = arith.constant dense<0.000000e+00> : vector<16x32xf32>
    %9 = tpu.matmul %0, %8, %cst_9 {dimension_numbers = #tpu.dot_dimension_numbers<[1], [0], [0], [1], [0, 0, 1, 1], [], []>} : vector<16x32xf32>, vector<32x32xf32>, vector<16x32xf32> -> vector<16x32xf32>
    %c0_10 = arith.constant 0 : index
    %c0_11 = arith.constant 0 : index
    %10 = vector.load %arg8[%c0_10, %c0_11] : memref<1x32xf32, #tpu.memory_space<vmem>>, vector<1x32xf32>
    %11 = vector.broadcast %10 : vector<1x32xf32> to vector<16x32xf32>
    %12 = arith.addf %9, %11 : vector<16x32xf32>
    %13 = tpu.iota {dimensions = array<i32: 0>} : vector<16x16xi32>
    %c2_i32 = arith.constant 2 : i32
    %c0_i32 = arith.constant 0 : i32
    %14 = arith.cmpi eq, %c2_i32, %c0_i32 : i32
    %c1_i32 = arith.constant 1 : i32
    %15 = arith.select %14, %c1_i32, %c2_i32 : i32
    %16 = vector.broadcast %15 : i32 to vector<16x16xi32>
    %17 = arith.remsi %13, %16 : vector<16x16xi32>
    %c0_i32_12 = arith.constant 0 : i32
    %18 = vector.broadcast %c0_i32_12 : i32 to vector<16x16xi32>
    %19 = arith.cmpi ne, %17, %18 : vector<16x16xi32>
    %c0_i32_13 = arith.constant 0 : i32
    %20 = vector.broadcast %c0_i32_13 : i32 to vector<16x16xi32>
    %21 = arith.cmpi slt, %17, %20 : vector<16x16xi32>
    %c0_i32_14 = arith.constant 0 : i32
    %22 = arith.cmpi slt, %15, %c0_i32_14 : i32
    %23 = vector.broadcast %22 : i1 to vector<16x16xi1>
    %24 = vector.broadcast %23 : vector<16x16xi1> to vector<16x16xi1>
    %25 = arith.xori %21, %24 : vector<16x16xi1>
    %26 = arith.andi %25, %19 : vector<16x16xi1>
    %27 = vector.broadcast %15 : i32 to vector<16x16xi32>
    %28 = arith.addi %17, %27 : vector<16x16xi32>
    %29 = arith.select %26, %28, %17 : vector<16x16xi1>, vector<16x16xi32>
    %30 = tpu.iota {dimensions = array<i32: 1>} : vector<16x16xi32>
    %c2_i32_15 = arith.constant 2 : i32
    %c0_i32_16 = arith.constant 0 : i32
    %31 = arith.cmpi eq, %c2_i32_15, %c0_i32_16 : i32
    %c1_i32_17 = arith.constant 1 : i32
    %32 = arith.select %31, %c1_i32_17, %c2_i32_15 : i32
    %33 = vector.broadcast %32 : i32 to vector<16x16xi32>
    %34 = arith.remsi %30, %33 : vector<16x16xi32>
    %c0_i32_18 = arith.constant 0 : i32
    %35 = vector.broadcast %c0_i32_18 : i32 to vector<16x16xi32>
    %36 = arith.cmpi ne, %34, %35 : vector<16x16xi32>
    %c0_i32_19 = arith.constant 0 : i32
    %37 = vector.broadcast %c0_i32_19 : i32 to vector<16x16xi32>
    %38 = arith.cmpi slt, %34, %37 : vector<16x16xi32>
    %c0_i32_20 = arith.constant 0 : i32
    %39 = arith.cmpi slt, %32, %c0_i32_20 : i32
    %40 = vector.broadcast %39 : i1 to vector<16x16xi1>
    %41 = vector.broadcast %40 : vector<16x16xi1> to vector<16x16xi1>
    %42 = arith.xori %38, %41 : vector<16x16xi1>
    %43 = arith.andi %42, %36 : vector<16x16xi1>
    %44 = vector.broadcast %32 : i32 to vector<16x16xi32>
    %45 = arith.addi %34, %44 : vector<16x16xi32>
    %46 = arith.select %43, %45, %34 : vector<16x16xi1>, vector<16x16xi32>
    %47 = arith.cmpi eq, %29, %46 : vector<16x16xi32>
    %48 = vector.extract_strided_slice %7 {offsets = [0, 0], sizes = [16, 8], strides = [1, 1]} : vector<16x64xf32> to vector<16x8xf32>
    %cst_21 = arith.constant 0.353553385 : f32
    %49 = vector.broadcast %cst_21 : f32 to vector<16x8xf32>
    %50 = arith.mulf %48, %49 : vector<16x8xf32>
    %51 = vector.extract_strided_slice %7 {offsets = [0, 32], sizes = [16, 8], strides = [1, 1]} : vector<16x64xf32> to vector<16x8xf32>
    %52 = vector.extract_strided_slice %12 {offsets = [0, 0], sizes = [16, 8], strides = [1, 1]} : vector<16x32xf32> to vector<16x8xf32>
    %cst_22 = arith.constant dense<0.000000e+00> : vector<16x16xf32>
    %53 = tpu.matmul %50, %51, %cst_22 {dimension_numbers = #tpu.dot_dimension_numbers<[1], [1], [0], [0], [0, 0, 1, 0], [], []>} : vector<16x8xf32>, vector<16x8xf32>, vector<16x16xf32> -> vector<16x16xf32>
    %cst_23 = arith.constant -1.000000e+30 : f32
    %54 = vector.broadcast %cst_23 : f32 to vector<16x16xf32>
    %55 = arith.select %47, %53, %54 : vector<16x16xi1>, vector<16x16xf32>
    %cst_24 = arith.constant dense<0xFF800000> : vector<16xf32>
    %56 = vector.multi_reduction <maximumf>, %55, %cst_24 [1] : vector<16x16xf32> to vector<16xf32>
    %57 = vector.shape_cast %56 : vector<16xf32> to vector<16x1xf32>
    %58 = vector.broadcast %57 : vector<16x1xf32> to vector<16x16xf32>
    %59 = arith.subf %55, %58 : vector<16x16xf32>
    %60 = math.exp %59 : vector<16x16xf32>
    %cst_25 = arith.constant dense<0.000000e+00> : vector<16xf32>
    %61 = vector.multi_reduction <add>, %60, %cst_25 [1] : vector<16x16xf32> to vector<16xf32>
    %62 = vector.shape_cast %61 : vector<16xf32> to vector<16x1xf32>
    %63 = vector.broadcast %62 : vector<16x1xf32> to vector<16x16xf32>
    %64 = arith.divf %60, %63 : vector<16x16xf32>
    %cst_26 = arith.constant dense<0.000000e+00> : vector<16x8xf32>
    %65 = tpu.matmul %64, %52, %cst_26 {dimension_numbers = #tpu.dot_dimension_numbers<[1], [0], [0], [1], [0, 0, 1, 1], [], []>} : vector<16x16xf32>, vector<16x8xf32>, vector<16x8xf32> -> vector<16x8xf32>
    %66 = vector.extract_strided_slice %7 {offsets = [0, 8], sizes = [16, 8], strides = [1, 1]} : vector<16x64xf32> to vector<16x8xf32>
    %cst_27 = arith.constant 0.353553385 : f32
    %67 = vector.broadcast %cst_27 : f32 to vector<16x8xf32>
    %68 = arith.mulf %66, %67 : vector<16x8xf32>
    %69 = vector.extract_strided_slice %7 {offsets = [0, 40], sizes = [16, 8], strides = [1, 1]} : vector<16x64xf32> to vector<16x8xf32>
    %70 = vector.extract_strided_slice %12 {offsets = [0, 8], sizes = [16, 8], strides = [1, 1]} : vector<16x32xf32> to vector<16x8xf32>
    %cst_28 = arith.constant dense<0.000000e+00> : vector<16x16xf32>
    %71 = tpu.matmul %68, %69, %cst_28 {dimension_numbers = #tpu.dot_dimension_numbers<[1], [1], [0], [0], [0, 0, 1, 0], [], []>} : vector<16x8xf32>, vector<16x8xf32>, vector<16x16xf32> -> vector<16x16xf32>
    %cst_29 = arith.constant -1.000000e+30 : f32
    %72 = vector.broadcast %cst_29 : f32 to vector<16x16xf32>
    %73 = arith.select %47, %71, %72 : vector<16x16xi1>, vector<16x16xf32>
    %cst_30 = arith.constant dense<0xFF800000> : vector<16xf32>
    %74 = vector.multi_reduction <maximumf>, %73, %cst_30 [1] : vector<16x16xf32> to vector<16xf32>
    %75 = vector.shape_cast %74 : vector<16xf32> to vector<16x1xf32>
    %76 = vector.broadcast %75 : vector<16x1xf32> to vector<16x16xf32>
    %77 = arith.subf %73, %76 : vector<16x16xf32>
    %78 = math.exp %77 : vector<16x16xf32>
    %cst_31 = arith.constant dense<0.000000e+00> : vector<16xf32>
    %79 = vector.multi_reduction <add>, %78, %cst_31 [1] : vector<16x16xf32> to vector<16xf32>
    %80 = vector.shape_cast %79 : vector<16xf32> to vector<16x1xf32>
    %81 = vector.broadcast %80 : vector<16x1xf32> to vector<16x16xf32>
    %82 = arith.divf %78, %81 : vector<16x16xf32>
    %cst_32 = arith.constant dense<0.000000e+00> : vector<16x8xf32>
    %83 = tpu.matmul %82, %70, %cst_32 {dimension_numbers = #tpu.dot_dimension_numbers<[1], [0], [0], [1], [0, 0, 1, 1], [], []>} : vector<16x16xf32>, vector<16x8xf32>, vector<16x8xf32> -> vector<16x8xf32>
    %84 = vector.extract_strided_slice %7 {offsets = [0, 16], sizes = [16, 8], strides = [1, 1]} : vector<16x64xf32> to vector<16x8xf32>
    %cst_33 = arith.constant 0.353553385 : f32
    %85 = vector.broadcast %cst_33 : f32 to vector<16x8xf32>
    %86 = arith.mulf %84, %85 : vector<16x8xf32>
    %87 = vector.extract_strided_slice %7 {offsets = [0, 48], sizes = [16, 8], strides = [1, 1]} : vector<16x64xf32> to vector<16x8xf32>
    %88 = vector.extract_strided_slice %12 {offsets = [0, 16], sizes = [16, 8], strides = [1, 1]} : vector<16x32xf32> to vector<16x8xf32>
    %cst_34 = arith.constant dense<0.000000e+00> : vector<16x16xf32>
    %89 = tpu.matmul %86, %87, %cst_34 {dimension_numbers = #tpu.dot_dimension_numbers<[1], [1], [0], [0], [0, 0, 1, 0], [], []>} : vector<16x8xf32>, vector<16x8xf32>, vector<16x16xf32> -> vector<16x16xf32>
    %cst_35 = arith.constant -1.000000e+30 : f32
    %90 = vector.broadcast %cst_35 : f32 to vector<16x16xf32>
    %91 = arith.select %47, %89, %90 : vector<16x16xi1>, vector<16x16xf32>
    %cst_36 = arith.constant dense<0xFF800000> : vector<16xf32>
    %92 = vector.multi_reduction <maximumf>, %91, %cst_36 [1] : vector<16x16xf32> to vector<16xf32>
    %93 = vector.shape_cast %92 : vector<16xf32> to vector<16x1xf32>
    %94 = vector.broadcast %93 : vector<16x1xf32> to vector<16x16xf32>
    %95 = arith.subf %91, %94 : vector<16x16xf32>
    %96 = math.exp %95 : vector<16x16xf32>
    %cst_37 = arith.constant dense<0.000000e+00> : vector<16xf32>
    %97 = vector.multi_reduction <add>, %96, %cst_37 [1] : vector<16x16xf32> to vector<16xf32>
    %98 = vector.shape_cast %97 : vector<16xf32> to vector<16x1xf32>
    %99 = vector.broadcast %98 : vector<16x1xf32> to vector<16x16xf32>
    %100 = arith.divf %96, %99 : vector<16x16xf32>
    %cst_38 = arith.constant dense<0.000000e+00> : vector<16x8xf32>
    %101 = tpu.matmul %100, %88, %cst_38 {dimension_numbers = #tpu.dot_dimension_numbers<[1], [0], [0], [1], [0, 0, 1, 1], [], []>} : vector<16x16xf32>, vector<16x8xf32>, vector<16x8xf32> -> vector<16x8xf32>
    %102 = vector.extract_strided_slice %7 {offsets = [0, 24], sizes = [16, 8], strides = [1, 1]} : vector<16x64xf32> to vector<16x8xf32>
    %cst_39 = arith.constant 0.353553385 : f32
    %103 = vector.broadcast %cst_39 : f32 to vector<16x8xf32>
    %104 = arith.mulf %102, %103 : vector<16x8xf32>
    %105 = vector.extract_strided_slice %7 {offsets = [0, 56], sizes = [16, 8], strides = [1, 1]} : vector<16x64xf32> to vector<16x8xf32>
    %106 = vector.extract_strided_slice %12 {offsets = [0, 24], sizes = [16, 8], strides = [1, 1]} : vector<16x32xf32> to vector<16x8xf32>
    %cst_40 = arith.constant dense<0.000000e+00> : vector<16x16xf32>
    %107 = tpu.matmul %104, %105, %cst_40 {dimension_numbers = #tpu.dot_dimension_numbers<[1], [1], [0], [0], [0, 0, 1, 0], [], []>} : vector<16x8xf32>, vector<16x8xf32>, vector<16x16xf32> -> vector<16x16xf32>
    %cst_41 = arith.constant -1.000000e+30 : f32
    %108 = vector.broadcast %cst_41 : f32 to vector<16x16xf32>
    %109 = arith.select %47, %107, %108 : vector<16x16xi1>, vector<16x16xf32>
    %cst_42 = arith.constant dense<0xFF800000> : vector<16xf32>
    %110 = vector.multi_reduction <maximumf>, %109, %cst_42 [1] : vector<16x16xf32> to vector<16xf32>
    %111 = vector.shape_cast %110 : vector<16xf32> to vector<16x1xf32>
    %112 = vector.broadcast %111 : vector<16x1xf32> to vector<16x16xf32>
    %113 = arith.subf %109, %112 : vector<16x16xf32>
    %114 = math.exp %113 : vector<16x16xf32>
    %cst_43 = arith.constant dense<0.000000e+00> : vector<16xf32>
    %115 = vector.multi_reduction <add>, %114, %cst_43 [1] : vector<16x16xf32> to vector<16xf32>
    %116 = vector.shape_cast %115 : vector<16xf32> to vector<16x1xf32>
    %117 = vector.broadcast %116 : vector<16x1xf32> to vector<16x16xf32>
    %118 = arith.divf %114, %117 : vector<16x16xf32>
    %cst_44 = arith.constant dense<0.000000e+00> : vector<16x8xf32>
    %119 = tpu.matmul %118, %106, %cst_44 {dimension_numbers = #tpu.dot_dimension_numbers<[1], [0], [0], [1], [0, 0, 1, 1], [], []>} : vector<16x16xf32>, vector<16x8xf32>, vector<16x8xf32> -> vector<16x8xf32>
    %120 = tpu.concatenate %65, %83, %101, %119 in 1 : vector<16x8xf32>, vector<16x8xf32>, vector<16x8xf32>, vector<16x8xf32> -> vector<16x32xf32>
    %c0_45 = arith.constant 0 : index
    %c0_46 = arith.constant 0 : index
    %121 = vector.load %arg4[%c0_45, %c0_46] : memref<32x32xf32, #tpu.memory_space<vmem>>, vector<32x32xf32>
    %cst_47 = arith.constant dense<0.000000e+00> : vector<16x32xf32>
    %122 = tpu.matmul %120, %121, %cst_47 {dimension_numbers = #tpu.dot_dimension_numbers<[1], [0], [0], [1], [0, 0, 1, 1], [], []>} : vector<16x32xf32>, vector<32x32xf32>, vector<16x32xf32> -> vector<16x32xf32>
    %c0_48 = arith.constant 0 : index
    %c0_49 = arith.constant 0 : index
    %123 = vector.load %arg9[%c0_48, %c0_49] : memref<1x32xf32, #tpu.memory_space<vmem>>, vector<1x32xf32>
    %124 = vector.broadcast %123 : vector<1x32xf32> to vector<16x32xf32>
    %125 = arith.addf %122, %124 : vector<16x32xf32>
    %126 = arith.addf %0, %125 : vector<16x32xf32>
    %cst_50 = arith.constant dense<0.000000e+00> : vector<16xf32>
    %127 = vector.multi_reduction <add>, %126, %cst_50 [1] : vector<16x32xf32> to vector<16xf32>
    %128 = vector.shape_cast %127 : vector<16xf32> to vector<16x1xf32>
    %cst_51 = arith.constant 3.200000e+01 : f32
    %129 = vector.broadcast %cst_51 : f32 to vector<16x1xf32>
    %130 = arith.divf %128, %129 : vector<16x1xf32>
    %131 = vector.broadcast %130 : vector<16x1xf32> to vector<16x32xf32>
    %132 = arith.subf %126, %131 : vector<16x32xf32>
    %133 = arith.mulf %132, %132 : vector<16x32xf32>
    %cst_52 = arith.constant dense<0.000000e+00> : vector<16xf32>
    %134 = vector.multi_reduction <add>, %133, %cst_52 [1] : vector<16x32xf32> to vector<16xf32>
    %135 = vector.shape_cast %134 : vector<16xf32> to vector<16x1xf32>
    %cst_53 = arith.constant 3.200000e+01 : f32
    %136 = vector.broadcast %cst_53 : f32 to vector<16x1xf32>
    %137 = arith.divf %135, %136 : vector<16x1xf32>
    %138 = vector.broadcast %130 : vector<16x1xf32> to vector<16x32xf32>
    %139 = arith.subf %126, %138 : vector<16x32xf32>
    %cst_54 = arith.constant 9.99999974E-6 : f32
    %140 = vector.broadcast %cst_54 : f32 to vector<16x1xf32>
    %141 = arith.addf %137, %140 : vector<16x1xf32>
    %142 = math.rsqrt %141 : vector<16x1xf32>
    %143 = vector.broadcast %142 : vector<16x1xf32> to vector<16x32xf32>
    %144 = arith.mulf %139, %143 : vector<16x32xf32>
    %c0_55 = arith.constant 0 : index
    %c0_56 = arith.constant 0 : index
    %145 = vector.load %arg12[%c0_55, %c0_56] : memref<1x32xf32, #tpu.memory_space<vmem>>, vector<1x32xf32>
    %146 = vector.broadcast %145 : vector<1x32xf32> to vector<16x32xf32>
    %147 = arith.mulf %144, %146 : vector<16x32xf32>
    %c0_57 = arith.constant 0 : index
    %c0_58 = arith.constant 0 : index
    %148 = vector.load %arg13[%c0_57, %c0_58] : memref<1x32xf32, #tpu.memory_space<vmem>>, vector<1x32xf32>
    %149 = vector.broadcast %148 : vector<1x32xf32> to vector<16x32xf32>
    %150 = arith.addf %147, %149 : vector<16x32xf32>
    %c0_59 = arith.constant 0 : index
    %c0_60 = arith.constant 0 : index
    %151 = vector.load %arg5[%c0_59, %c0_60] : memref<32x64xf32, #tpu.memory_space<vmem>>, vector<32x64xf32>
    %cst_61 = arith.constant dense<0.000000e+00> : vector<16x64xf32>
    %152 = tpu.matmul %150, %151, %cst_61 {dimension_numbers = #tpu.dot_dimension_numbers<[1], [0], [0], [1], [0, 0, 1, 1], [], []>} : vector<16x32xf32>, vector<32x64xf32>, vector<16x64xf32> -> vector<16x64xf32>
    %c0_62 = arith.constant 0 : index
    %c0_63 = arith.constant 0 : index
    %153 = vector.load %arg10[%c0_62, %c0_63] : memref<1x64xf32, #tpu.memory_space<vmem>>, vector<1x64xf32>
    %154 = vector.broadcast %153 : vector<1x64xf32> to vector<16x64xf32>
    %155 = arith.addf %152, %154 : vector<16x64xf32>
    %cst_64 = arith.constant 0.000000e+00 : f32
    %156 = vector.broadcast %cst_64 : f32 to vector<16x64xf32>
    %157 = arith.maximumf %155, %156 : vector<16x64xf32>
    %c0_65 = arith.constant 0 : index
    %c0_66 = arith.constant 0 : index
    %158 = vector.load %arg6[%c0_65, %c0_66] : memref<64x32xf32, #tpu.memory_space<vmem>>, vector<64x32xf32>
    %cst_67 = arith.constant dense<0.000000e+00> : vector<16x32xf32>
    %159 = tpu.matmul %157, %158, %cst_67 {dimension_numbers = #tpu.dot_dimension_numbers<[1], [0], [0], [1], [0, 0, 1, 1], [], []>} : vector<16x64xf32>, vector<64x32xf32>, vector<16x32xf32> -> vector<16x32xf32>
    %c0_68 = arith.constant 0 : index
    %c0_69 = arith.constant 0 : index
    %160 = vector.load %arg11[%c0_68, %c0_69] : memref<1x32xf32, #tpu.memory_space<vmem>>, vector<1x32xf32>
    %161 = vector.broadcast %160 : vector<1x32xf32> to vector<16x32xf32>
    %162 = arith.addf %159, %161 : vector<16x32xf32>
    %163 = arith.addf %150, %162 : vector<16x32xf32>
    %cst_70 = arith.constant dense<0.000000e+00> : vector<16xf32>
    %164 = vector.multi_reduction <add>, %163, %cst_70 [1] : vector<16x32xf32> to vector<16xf32>
    %165 = vector.shape_cast %164 : vector<16xf32> to vector<16x1xf32>
    %cst_71 = arith.constant 3.200000e+01 : f32
    %166 = vector.broadcast %cst_71 : f32 to vector<16x1xf32>
    %167 = arith.divf %165, %166 : vector<16x1xf32>
    %168 = vector.broadcast %167 : vector<16x1xf32> to vector<16x32xf32>
    %169 = arith.subf %163, %168 : vector<16x32xf32>
    %170 = arith.mulf %169, %169 : vector<16x32xf32>
    %cst_72 = arith.constant dense<0.000000e+00> : vector<16xf32>
    %171 = vector.multi_reduction <add>, %170, %cst_72 [1] : vector<16x32xf32> to vector<16xf32>
    %172 = vector.shape_cast %171 : vector<16xf32> to vector<16x1xf32>
    %cst_73 = arith.constant 3.200000e+01 : f32
    %173 = vector.broadcast %cst_73 : f32 to vector<16x1xf32>
    %174 = arith.divf %172, %173 : vector<16x1xf32>
    %175 = vector.broadcast %167 : vector<16x1xf32> to vector<16x32xf32>
    %176 = arith.subf %163, %175 : vector<16x32xf32>
    %cst_74 = arith.constant 9.99999974E-6 : f32
    %177 = vector.broadcast %cst_74 : f32 to vector<16x1xf32>
    %178 = arith.addf %174, %177 : vector<16x1xf32>
    %179 = math.rsqrt %178 : vector<16x1xf32>
    %180 = vector.broadcast %179 : vector<16x1xf32> to vector<16x32xf32>
    %181 = arith.mulf %176, %180 : vector<16x32xf32>
    %c0_75 = arith.constant 0 : index
    %c0_76 = arith.constant 0 : index
    %182 = vector.load %arg14[%c0_75, %c0_76] : memref<1x32xf32, #tpu.memory_space<vmem>>, vector<1x32xf32>
    %183 = vector.broadcast %182 : vector<1x32xf32> to vector<16x32xf32>
    %184 = arith.mulf %181, %183 : vector<16x32xf32>
    %c0_77 = arith.constant 0 : index
    %c0_78 = arith.constant 0 : index
    %185 = vector.load %arg15[%c0_77, %c0_78] : memref<1x32xf32, #tpu.memory_space<vmem>>, vector<1x32xf32>
    %186 = vector.broadcast %185 : vector<1x32xf32> to vector<16x32xf32>
    %187 = arith.addf %184, %186 : vector<16x32xf32>
    %c0_79 = arith.constant 0 : index
    %c0_80 = arith.constant 0 : index
    %188 = vector.load %arg16[%c0_79, %c0_80] : memref<16x32xf32, #tpu.memory_space<vmem>>, vector<16x32xf32>
    tpu.vector_store %arg16[%c0_79, %c0_80], %187 {strides = array<i32>} : memref<16x32xf32, #tpu.memory_space<vmem>>, vector<16x32xf32>,
    return
  }
}

</mosaic_0001>

<llo_original>
// kernel: tpu_custom_call.1
$region0: #{tpu_custom_call.1}
  #allocation0 [shape = 'u32[]', space=smem, size = 0x4, offset = 0x4, fixed_abs, tag = 'smem constant byte address 0x4 - core index']
  #allocation1 [shape = 'u32[144,128]{1,0:T(1,128)}', space=vmem, size = 0x12000, scoped, tag = 'internal scratch']
  %s0 = inlined_call_operand.hbm [shape: f32[16,32], index: 0, kind: input, shape index: {}]
  %s1 = inlined_call_operand.hbm [shape: f32[16,32], index: 1, kind: input, shape index: {}]
  %s2 = inlined_call_operand.vmem [shape: f32[32,64], index: 2, kind: input, shape index: {}]
  %s3 = inlined_call_operand.vmem [shape: f32[32,32], index: 3, kind: input, shape index: {}]
  %s4 = inlined_call_operand.vmem [shape: f32[32,32], index: 4, kind: input, shape index: {}]
  %s5 = inlined_call_operand.hbm [shape: f32[32,64], index: 5, kind: input, shape index: {}]
  %s6 = inlined_call_operand.vmem [shape: f32[64,32], index: 6, kind: input, shape index: {}]
  %s7 = inlined_call_operand.vmem [shape: f32[1,64], index: 7, kind: input, shape index: {}]
  %s8 = inlined_call_operand.vmem [shape: f32[1,32], index: 8, kind: input, shape index: {}]
  %s9 = inlined_call_operand.vmem [shape: f32[1,32], index: 9, kind: input, shape index: {}]
  %s10 = inlined_call_operand.vmem [shape: f32[1,64], index: 10, kind: input, shape index: {}]
  %s11 = inlined_call_operand.vmem [shape: f32[1,32], index: 11, kind: input, shape index: {}]
  %s12 = inlined_call_operand.vmem [shape: f32[1,32], index: 12, kind: input, shape index: {}]
  %s13 = inlined_call_operand.vmem [shape: f32[1,32], index: 13, kind: input, shape index: {}]
  %s14 = inlined_call_operand.vmem [shape: f32[1,32], index: 14, kind: input, shape index: {}]
  %s15 = inlined_call_operand.vmem [shape: f32[1,32], index: 15, kind: input, shape index: {}]
  %s16 = inlined_call_operand.hbm [shape: f32[16,32], index: 16, kind: output, shape index: {}]
  %s17 = sld [smem:[#allocation0]]
  $region86: #{tpu_custom_call.1} parent=0
    _
  %s19 = ssub.s32 1, %s17
  %s20 = scalar_select 0, %s19, %s17
  $region1: #{tpu_custom_call.1} parent=0
    #allocation2 [shape = 'u8[8192]{0}', space=vmem, size = 0x2000, scoped, tag = 'input window, operand 0, single buffered']
    #allocation3 [shape = 's32[1]{0}', space=sflag, size = 0x4, scoped, tag = 'scoped memory for tpu_custom_call.1']
    #allocation4 [shape = 's32[1]{0}', space=sflag, size = 0x4, scoped, tag = 'scoped memory for tpu_custom_call.1']
    #allocation5 [shape = 'u8[8192]{0}', space=vmem, size = 0x2000, scoped, tag = 'input window, operand 1, single buffered']
    #allocation6 [shape = 's32[1]{0}', space=sflag, size = 0x4, scoped, tag = 'scoped memory for tpu_custom_call.1']
    #allocation7 [shape = 'u8[16384]{0}', space=vmem, size = 0x4000, scoped, tag = 'input window, operand 5, single buffered']
    #allocation8 [shape = 'u8[8192]{0}', space=vmem, size = 0x2000, scoped, tag = 'output window, operand 0, single buffered']
    %21 = vsyncpa [#allocation3], 0
    %22 = vsyncpa [#allocation6], 0
    %23 = vsyncpa [#allocation4], 0
    // Predicated region
    $region2: #{tpu_custom_call.1} parent=1 // pred_check
      _
    $region3: #{tpu_custom_call.1} parent=1 // pred_check_branch
      %25 = sbr.rel (0) target = $region5
    $region4: #{tpu_custom_call.1} parent=1 // pred_region
      %s27 = ssub.s32 256, 256
      %28 = vsyncadd [#allocation3], %s27
      %s29 = sshll.u32 [#allocation2], 4
      %s30 = int_to_ptr.vmem [resolvable:$true] %s29
      %35 = dma.hbm_to_vmem [thread:$0]  %s0, 256, %s30, [#allocation3], 128, 128, 8
    $region5: #{tpu_custom_call.1} parent=1 // pred_fallthru
      _
    // Predicated region
    $region6: #{tpu_custom_call.1} parent=1 // pred_check
      _
    $region7: #{tpu_custom_call.1} parent=1 // pred_check_branch
      %37 = sbr.rel (0) target = $region9
    $region8: #{tpu_custom_call.1} parent=1 // pred_region
      %s39 = ssub.s32 256, 256
      %40 = vsyncadd [#allocation6], %s39
      %s41 = sshll.u32 [#allocation5], 4
      %s42 = int_to_ptr.vmem [resolvable:$true] %s41
      %47 = dma.hbm_to_vmem [thread:$0]  %s1, 256, %s42, [#allocation6], 128, 128, 8
    $region9: #{tpu_custom_call.1} parent=1 // pred_fallthru
      _
    // Predicated region
    $region10: #{tpu_custom_call.1} parent=1 // pred_check
      _
    $region11: #{tpu_custom_call.1} parent=1 // pred_check_branch
      %49 = sbr.rel (0) target = $region13
    $region12: #{tpu_custom_call.1} parent=1 // pred_region
      _
    $region13: #{tpu_custom_call.1} parent=1 // pred_fallthru
      _
    // Predicated region
    $region14: #{tpu_custom_call.1} parent=1 // pred_check
      _
    $region15: #{tpu_custom_call.1} parent=1 // pred_check_branch
      %51 = sbr.rel (0) target = $region17
    $region16: #{tpu_custom_call.1} parent=1 // pred_region
      _
    $region17: #{tpu_custom_call.1} parent=1 // pred_fallthru
      _
    // Predicated region
    $region18: #{tpu_custom_call.1} parent=1 // pred_check
      _
    $region19: #{tpu_custom_call.1} parent=1 // pred_check_branch
      %53 = sbr.rel (0) target = $region21
    $region20: #{tpu_custom_call.1} parent=1 // pred_region
      _
    $region21: #{tpu_custom_call.1} parent=1 // pred_fallthru
      _
    // Predicated region
    $region22: #{tpu_custom_call.1} parent=1 // pred_check
      _
    $region23: #{tpu_custom_call.1} parent=1 // pred_check_branch
      %55 = sbr.rel (0) target = $region25
    $region24: #{tpu_custom_call.1} parent=1 // pred_region
      %s57 = ssub.s32 512, 512
      %58 = vsyncadd [#allocation6], %s57
      %s59 = sshll.u32 [#allocation7], 4
      %s60 = int_to_ptr.vmem [resolvable:$true] %s59
      %65 = dma.hbm_to_vmem [thread:$0]  %s5, 512, %s60, [#allocation6], 128, 128, 8
    $region25: #{tpu_custom_call.1} parent=1 // pred_fallthru
      _
    // Predicated region
    $region26: #{tpu_custom_call.1} parent=1 // pred_check
      _
    $region27: #{tpu_custom_call.1} parent=1 // pred_check_branch
      %67 = sbr.rel (0) target = $region29
    $region28: #{tpu_custom_call.1} parent=1 // pred_region
      _
    $region29: #{tpu_custom_call.1} parent=1 // pred_fallthru
      _
    // Predicated region
    $region30: #{tpu_custom_call.1} parent=1 // pred_check
      _
    $region31: #{tpu_custom_call.1} parent=1 // pred_check_branch
      %69 = sbr.rel (0) target = $region33
    $region32: #{tpu_custom_call.1} parent=1 // pred_region
      _
    $region33: #{tpu_custom_call.1} parent=1 // pred_fallthru
      _
    // Predicated region
    $region34: #{tpu_custom_call.1} parent=1 // pred_check
      _
    $region35: #{tpu_custom_call.1} parent=1 // pred_check_branch
      %71 = sbr.rel (0) target = $region37
    $region36: #{tpu_custom_call.1} parent=1 // pred_region
      _
    $region37: #{tpu_custom_call.1} parent=1 // pred_fallthru
      _
    // Predicated region
    $region38: #{tpu_custom_call.1} parent=1 // pred_check
      _
    $region39: #{tpu_custom_call.1} parent=1 // pred_check_branch
      %73 = sbr.rel (0) target = $region41
    $region40: #{tpu_custom_call.1} parent=1 // pred_region
      _
    $region41: #{tpu_custom_call.1} parent=1 // pred_fallthru
      _
    // Predicated region
    $region42: #{tpu_custom_call.1} parent=1 // pred_check
      _
    $region43: #{tpu_custom_call.1} parent=1 // pred_check_branch
      %75 = sbr.rel (0) target = $region45
    $region44: #{tpu_custom_call.1} parent=1 // pred_region
      _
    $region45: #{tpu_custom_call.1} parent=1 // pred_fallthru
      _
    // Predicated region
    $region46: #{tpu_custom_call.1} parent=1 // pred_check
      _
    $region47: #{tpu_custom_call.1} parent=1 // pred_check_branch
      %77 = sbr.rel (0) target = $region49
    $region48: #{tpu_custom_call.1} parent=1 // pred_region
      _
    $region49: #{tpu_custom_call.1} parent=1 // pred_fallthru
      _
    // Predicated region
    $region50: #{tpu_custom_call.1} parent=1 // pred_check
      _
    $region51: #{tpu_custom_call.1} parent=1 // pred_check_branch
      %79 = sbr.rel (0) target = $region53
    $region52: #{tpu_custom_call.1} parent=1 // pred_region
      _
    $region53: #{tpu_custom_call.1} parent=1 // pred_fallthru
      _
    // Predicated region
    $region54: #{tpu_custom_call.1} parent=1 // pred_check
      _
    $region55: #{tpu_custom_call.1} parent=1 // pred_check_branch
      %81 = sbr.rel (0) target = $region57
    $region56: #{tpu_custom_call.1} parent=1 // pred_region
      _
    $region57: #{tpu_custom_call.1} parent=1 // pred_fallthru
      _
    // Predicated region
    $region58: #{tpu_custom_call.1} parent=1 // pred_check
      _
    $region59: #{tpu_custom_call.1} parent=1 // pred_check_branch
      %83 = sbr.rel (0) target = $region61
    $region60: #{tpu_custom_call.1} parent=1 // pred_region
      _
    $region61: #{tpu_custom_call.1} parent=1 // pred_fallthru
      _
    // Predicated region
    $region62: #{tpu_custom_call.1} parent=1 // pred_check
      _
    $region63: #{tpu_custom_call.1} parent=1 // pred_check_branch
      %85 = sbr.rel (0) target = $region65
    $region64: #{tpu_custom_call.1} parent=1 // pred_region
      _
    $region65: #{tpu_custom_call.1} parent=1 // pred_fallthru
      _
    // Predicated region
    $region66: #{tpu_custom_call.1} parent=1 // pred_check
      _
    $region67: #{tpu_custom_call.1} parent=1 // pred_check_branch
      %87 = sbr.rel (0) target = $region69
    $region68: #{tpu_custom_call.1} parent=1 // pred_region
      %88 = dma.done [#allocation3], 256
    $region69: #{tpu_custom_call.1} parent=1 // pred_fallthru
      _
    // Predicated region
    $region70: #{tpu_custom_call.1} parent=1 // pred_check
      _
    $region71: #{tpu_custom_call.1} parent=1 // pred_check_branch
      %90 = sbr.rel (0) target = $region73
    $region72: #{tpu_custom_call.1} parent=1 // pred_region
      %91 = dma.done [#allocation6], 256
    $region73: #{tpu_custom_call.1} parent=1 // pred_fallthru
      _
    // Predicated region
    $region74: #{tpu_custom_call.1} parent=1 // pred_check
      _
    $region75: #{tpu_custom_call.1} parent=1 // pred_check_branch
      %93 = sbr.rel (0) target = $region77
    $region76: #{tpu_custom_call.1} parent=1 // pred_region
      %94 = dma.done [#allocation6], 512
    $region77: #{tpu_custom_call.1} parent=1 // pred_fallthru
      _
    %v95 = vld [vmem:[#allocation2] sm:$0xff]
    %v96 = vld [vmem:[#allocation2 + $0x8] sm:$0xff]
    %v97 = vld [vmem:[#allocation5] sm:$0xff]
    %v98 = vld [vmem:[#allocation5 + $0x8] sm:$0xff]
    %v99 = vadd.f32 %v95, %v97
    %v100 = vadd.f32 %v96, %v98
    %v101 = vld [vmem:[%s2] sm:$0xff]
    %v102 = vld [vmem:[%s2 + $0x8] sm:$0xff]
    %v103 = vld [vmem:[%s2 + $0x10] sm:$0xff]
    %v104 = vld [vmem:[%s2 + $0x18] sm:$0xff]
    %v105 = vld [vmem:[%s7] sm:$0x1]
    %v107 = vlaneseq
    %v108 = vshrl.u32 %v107, 7
    %v109 = vsub.s32 0, %v108
    %v110 = vrot.slane %v105, %v109
    %vm112 = vcmask 261120
    %v114 = vsel %vm112, %v99, 0
    %v117 = vsel %vm112, %v100, 0
    %119 = vmatprep.subr.mxu0 0.0
    %120 = vmatpush1.msra.mxu0 0.0
    %121 = vmatprep.subr.mxu0 0.0
    %122 = vmatpush1.msra.mxu0 0.0
    %123 = vmatprep.subr.mxu0 0.0
    %124 = vmatpush1.msra.mxu0 0.0
    %125 = vmatprep.subr.mxu0 0.0
    %126 = vmatpush1.msra.mxu0 0.0
    %127 = vmatprep.subr.mxu0 0.0
    %128 = vmatpush1.msra.mxu0 0.0
    %129 = vmatprep.subr.mxu0 0.0
    %130 = vmatpush1.msra.mxu0 0.0
    %131 = vmatprep.subr.mxu0 0.0
    %132 = vmatpush1.msra.mxu0 0.0
    %133 = vmatprep.subr.mxu0 0.0
    %134 = vmatpush1.msra.mxu0 0.0
    %135 = vmatprep.subr.mxu0 0.0
    %136 = vmatpush1.msra.mxu0 0.0
    %137 = vmatprep.subr.mxu0 0.0
    %138 = vmatpush1.msra.mxu0 0.0
    %139 = vmatprep.subr.mxu0 0.0
    %140 = vmatpush1.msra.mxu0 0.0
    %141 = vmatprep.subr.mxu0 0.0
    %142 = vmatpush1.msra.mxu0 0.0
    %143 = vmatprep.subr.mxu0 0.0
    %144 = vmatpush1.msra.mxu0 %v104
    %145 = vmatprep.subr.mxu0 0.0
    %146 = vmatpush1.msra.mxu0 %v103
    %147 = vmatprep.subr.mxu0 0.0
    %148 = vmatpush1.msra.mxu0 %v102
    %149 = vmatprep.subr.mxu0 0.0
    %150 = vmatpush1.msra.mxu0 %v101
    %151 = vmatprep.subr.mxu0 0.0
    %152 = vmatpush2.msra.mxu0 0.0
    %153 = vmatprep.subr.mxu0 0.0
    %154 = vmatpush2.msra.mxu0 0.0
    %155 = vmatprep.subr.mxu0 0.0
    %156 = vmatpush2.msra.mxu0 0.0
    %157 = vmatprep.subr.mxu0 0.0
    %158 = vmatpush2.msra.mxu0 0.0
    %159 = vmatprep.subr.mxu0 0.0
    %160 = vmatpush2.msra.mxu0 0.0
    %161 = vmatprep.subr.mxu0 0.0
    %162 = vmatpush2.msra.mxu0 0.0
    %163 = vmatprep.subr.mxu0 0.0
    %164 = vmatpush2.msra.mxu0 0.0
    %165 = vmatprep.subr.mxu0 0.0
    %166 = vmatpush2.msra.mxu0 0.0
    %167 = vmatprep.subr.mxu0 0.0
    %168 = vmatpush2.msra.mxu0 0.0
    %169 = vmatprep.subr.mxu0 0.0
    %170 = vmatpush2.msra.mxu0 0.0
    %171 = vmatprep.subr.mxu0 0.0
    %172 = vmatpush2.msra.mxu0 0.0
    %173 = vmatprep.subr.mxu0 0.0
    %174 = vmatpush2.msra.mxu0 0.0
    %175 = vmatprep.subr.mxu0 0.0
    %176 = vmatpush2.msra.mxu0 0.0
    %177 = vmatprep.subr.mxu0 0.0
    %178 = vmatpush2.msra.mxu0 0.0
    %179 = vmatprep.subr.mxu0 0.0
    %180 = vmatpush2.msra.mxu0 0.0
    %181 = vmatprep.subr.mxu0 0.0
    %182 = vmatpush2.msra.mxu0 0.0
    %183 = vmatprep.mubr.f32.mxu0 0.0
    %184 = vmatmul.mubr.f32.gmra.mxu0 %v114
    %v185 = vpop.f32.mrf.mxu0
    %v186 = vadd.f32 %v110, %v185
    %v187 = vpop.f32.mrf.mxu0
    %188 = vmatprep.mubr.f32.mxu0 0.0
    %189 = vmatmul.mubr.f32.gmra.mxu0 %v117
    %v190 = vpop.f32.mrf.mxu0
    %v191 = vadd.f32 %v110, %v190
    %v192 = vpop.f32.mrf.mxu0
    %193 = vdwg.mxu0
    %v194 = vld [vmem:[%s3] sm:$0xff]
    %v195 = vld [vmem:[%s3 + $0x8] sm:$0xff]
    %v196 = vld [vmem:[%s3 + $0x10] sm:$0xff]
    %v197 = vld [vmem:[%s3 + $0x18] sm:$0xff]
    %v198 = vld [vmem:[%s8] sm:$0x1]
    %v200 = vlaneseq
    %v201 = vshrl.u32 %v200, 7
    %v202 = vsub.s32 0, %v201
    %v203 = vrot.slane %v198, %v202
    %v206 = vsel %vm112, %v95, 0
    %v209 = vsel %vm112, %v96, 0
    %211 = vmatprep.subr.mxu0 0.0
    %212 = vmatpush1.msra.mxu0 0.0
    %213 = vmatprep.subr.mxu0 0.0
    %214 = vmatpush1.msra.mxu0 0.0
    %215 = vmatprep.subr.mxu0 0.0
    %216 = vmatpush1.msra.mxu0 0.0
    %217 = vmatprep.subr.mxu0 0.0
    %218 = vmatpush1.msra.mxu0 0.0
    %219 = vmatprep.subr.mxu0 0.0
    %220 = vmatpush1.msra.mxu0 0.0
    %221 = vmatprep.subr.mxu0 0.0
    %222 = vmatpush1.msra.mxu0 0.0
    %223 = vmatprep.subr.mxu0 0.0
    %224 = vmatpush1.msra.mxu0 0.0
    %225 = vmatprep.subr.mxu0 0.0
    %226 = vmatpush1.msra.mxu0 0.0
    %227 = vmatprep.subr.mxu0 0.0
    %228 = vmatpush1.msra.mxu0 0.0
    %229 = vmatprep.subr.mxu0 0.0
    %230 = vmatpush1.msra.mxu0 0.0
    %231 = vmatprep.subr.mxu0 0.0
    %232 = vmatpush1.msra.mxu0 0.0
    %233 = vmatprep.subr.mxu0 0.0
    %234 = vmatpush1.msra.mxu0 0.0
    %235 = vmatprep.subr.mxu0 0.0
    %236 = vmatpush1.msra.mxu0 %v197
    %237 = vmatprep.subr.mxu0 0.0
    %238 = vmatpush1.msra.mxu0 %v196
    %239 = vmatprep.subr.mxu0 0.0
    %240 = vmatpush1.msra.mxu0 %v195
    %241 = vmatprep.subr.mxu0 0.0
    %242 = vmatpush1.msra.mxu0 %v194
    %243 = vmatprep.subr.mxu0 0.0
    %244 = vmatpush2.msra.mxu0 0.0
    %245 = vmatprep.subr.mxu0 0.0
    %246 = vmatpush2.msra.mxu0 0.0
    %247 = vmatprep.subr.mxu0 0.0
    %248 = vmatpush2.msra.mxu0 0.0
    %249 = vmatprep.subr.mxu0 0.0
    %250 = vmatpush2.msra.mxu0 0.0
    %251 = vmatprep.subr.mxu0 0.0
    %252 = vmatpush2.msra.mxu0 0.0
    %253 = vmatprep.subr.mxu0 0.0
    %254 = vmatpush2.msra.mxu0 0.0
    %255 = vmatprep.subr.mxu0 0.0
    %256 = vmatpush2.msra.mxu0 0.0
    %257 = vmatprep.subr.mxu0 0.0
    %258 = vmatpush2.msra.mxu0 0.0
    %259 = vmatprep.subr.mxu0 0.0
    %260 = vmatpush2.msra.mxu0 0.0
    %261 = vmatprep.subr.mxu0 0.0
    %262 = vmatpush2.msra.mxu0 0.0
    %263 = vmatprep.subr.mxu0 0.0
    %264 = vmatpush2.msra.mxu0 0.0
    %265 = vmatprep.subr.mxu0 0.0
    %266 = vmatpush2.msra.mxu0 0.0
    %267 = vmatprep.subr.mxu0 0.0
    %268 = vmatpush2.msra.mxu0 0.0
    %269 = vmatprep.subr.mxu0 0.0
    %270 = vmatpush2.msra.mxu0 0.0
    %271 = vmatprep.subr.mxu0 0.0
    %272 = vmatpush2.msra.mxu0 0.0
    %273 = vmatprep.subr.mxu0 0.0
    %274 = vmatpush2.msra.mxu0 0.0
    %275 = vmatprep.mubr.f32.mxu0 0.0
    %276 = vmatmul.mubr.f32.gmra.mxu0 %v206
    %v277 = vpop.f32.mrf.mxu0
    %v278 = vadd.f32 %v203, %v277
    %v279 = vpop.f32.mrf.mxu0
    %280 = vmatprep.mubr.f32.mxu0 0.0
    %281 = vmatmul.mubr.f32.gmra.mxu0 %v209
    %v282 = vpop.f32.mrf.mxu0
    %v283 = vadd.f32 %v203, %v282
    %v284 = vpop.f32.mrf.mxu0
    %285 = vdwg.mxu0
    %v286 = vlaneseq
    %v287 = vshrl.u32 %v286, 7
    %v288 = vadd.s32 %v287, 8
    %vm289 = vcmp.lt.s32.totalorder %v287, 0
    %v290 = vsub.s32 0, %v287
    %v291 = vsel %vm289, %v290, %v287
    %v292 = vshrl.u32 %v291, 1
    %v293 = vand.u32 %v291, 1
    %v294 = vsub.s32 0, %v293
    %v295 = vsel %vm289, %v294, %v293
    %vm296 = vcmp.lt.s32.totalorder %v288, 0
    %v297 = vsub.s32 0, %v288
    %v298 = vsel %vm296, %v297, %v288
    %v299 = vshrl.u32 %v298, 1
    %v300 = vand.u32 %v298, 1
    %v301 = vsub.s32 0, %v300
    %v302 = vsel %vm296, %v301, %v300
    %vm303 = vcmp.ne.s32.totalorder %v295, 0
    %vm304 = vcmp.ne.s32.totalorder %v302, 0
    %vm305 = vcmp.lt.s32.totalorder %v295, 0
    %vm306 = vcmp.lt.s32.totalorder %v302, 0
    %vm307 = vmand %vm305, %vm303
    %vm308 = vmand %vm306, %vm304
    %v309 = vadd.s32 %v295, 2
    %v310 = vadd.s32 %v302, 2
    %v311 = vsel %vm307, %v309, %v295
    %v312 = vsel %vm308, %v310, %v302
    %v313 = vlaneseq
    %v314 = vand.u32 %v313, 127
    %vm315 = vcmp.lt.s32.totalorder %v314, 0
    %v316 = vsub.s32 0, %v314
    %v317 = vsel %vm315, %v316, %v314
    %v318 = vshrl.u32 %v317, 1
    %v319 = vand.u32 %v317, 1
    %v320 = vsub.s32 0, %v319
    %v321 = vsel %vm315, %v320, %v319
    %vm322 = vcmp.ne.s32.totalorder %v321, 0
    %vm323 = vcmp.lt.s32.totalorder %v321, 0
    %vm324 = vmand %vm323, %vm322
    %v325 = vadd.s32 %v321, 2
    %v326 = vsel %vm324, %v325, %v321
    %vm327 = vcmp.eq.s32.totalorder %v311, %v326
    %vm328 = vcmp.eq.s32.totalorder %v312, %v326
    %v329 = vmul.f32 %v186, 0.35355338
    %v330 = vmul.f32 %v191, 0.35355338
    %333 = vrot.lane.b32.xlu0 %v186, 96
    %v334 = vpop.permute.xlu0 %333
    %335 = vrot.lane.b32.xlu0 %v191, 96
    %v336 = vpop.permute.xlu0 %335
    %vm337 = vcmask 64512
    %v339 = vsel %vm337, %v329, 0
    %v342 = vsel %vm337, %v330, 0
    %v344 = vsel %vm337, %v334, 0
    %v346 = vsel %vm337, %v336, 0
    %348 = vmatprep.subr.mxu0 0.0
    %349 = vmatpush1.xpose.msra.mxu0 0.0
    %350 = vmatprep.subr.mxu0 0.0
    %351 = vmatpush1.xpose.msra.mxu0 0.0
    %352 = vmatprep.subr.mxu0 0.0
    %353 = vmatpush1.xpose.msra.mxu0 0.0
    %354 = vmatprep.subr.mxu0 0.0
    %355 = vmatpush1.xpose.msra.mxu0 0.0
    %356 = vmatprep.subr.mxu0 0.0
    %357 = vmatpush1.xpose.msra.mxu0 0.0
    %358 = vmatprep.subr.mxu0 0.0
    %359 = vmatpush1.xpose.msra.mxu0 0.0
    %360 = vmatprep.subr.mxu0 0.0
    %361 = vmatpush1.xpose.msra.mxu0 0.0
    %362 = vmatprep.subr.mxu0 0.0
    %363 = vmatpush1.xpose.msra.mxu0 0.0
    %364 = vmatprep.subr.mxu0 0.0
    %365 = vmatpush1.xpose.msra.mxu0 0.0
    %366 = vmatprep.subr.mxu0 0.0
    %367 = vmatpush1.xpose.msra.mxu0 0.0
    %368 = vmatprep.subr.mxu0 0.0
    %369 = vmatpush1.xpose.msra.mxu0 0.0
    %370 = vmatprep.subr.mxu0 0.0
    %371 = vmatpush1.xpose.msra.mxu0 0.0
    %372 = vmatprep.subr.mxu0 0.0
    %373 = vmatpush1.xpose.msra.mxu0 0.0
    %374 = vmatprep.subr.mxu0 0.0
    %375 = vmatpush1.xpose.msra.mxu0 0.0
    %376 = vmatprep.subr.mxu0 0.0
    %377 = vmatpush1.xpose.msra.mxu0 %v346
    %378 = vmatprep.subr.mxu0 0.0
    %379 = vmatpush1.xpose.msra.mxu0 %v344
    %380 = vmatprep.subr.mxu0 0.0
    %381 = vmatpush2.xpose.msra.mxu0 0.0
    %382 = vmatprep.subr.mxu0 0.0
    %383 = vmatpush2.xpose.msra.mxu0 0.0
    %384 = vmatprep.subr.mxu0 0.0
    %385 = vmatpush2.xpose.msra.mxu0 0.0
    %386 = vmatprep.subr.mxu0 0.0
    %387 = vmatpush2.xpose.msra.mxu0 0.0
    %388 = vmatprep.subr.mxu0 0.0
    %389 = vmatpush2.xpose.msra.mxu0 0.0
    %390 = vmatprep.subr.mxu0 0.0
    %391 = vmatpush2.xpose.msra.mxu0 0.0
    %392 = vmatprep.subr.mxu0 0.0
    %393 = vmatpush2.xpose.msra.mxu0 0.0
    %394 = vmatprep.subr.mxu0 0.0
    %395 = vmatpush2.xpose.msra.mxu0 0.0
    %396 = vmatprep.subr.mxu0 0.0
    %397 = vmatpush2.xpose.msra.mxu0 0.0
    %398 = vmatprep.subr.mxu0 0.0
    %399 = vmatpush2.xpose.msra.mxu0 0.0
    %400 = vmatprep.subr.mxu0 0.0
    %401 = vmatpush2.xpose.msra.mxu0 0.0
    %402 = vmatprep.subr.mxu0 0.0
    %403 = vmatpush2.xpose.msra.mxu0 0.0
    %404 = vmatprep.subr.mxu0 0.0
    %405 = vmatpush2.xpose.msra.mxu0 0.0
    %406 = vmatprep.subr.mxu0 0.0
    %407 = vmatpush2.xpose.msra.mxu0 0.0
    %408 = vmatprep.subr.mxu0 0.0
    %409 = vmatpush2.xpose.msra.mxu0 0.0
    %410 = vmatprep.subr.mxu0 0.0
    %411 = vmatpush2.xpose.msra.mxu0 0.0
    %412 = vmatprep.mubr.f32.mxu0 0.0
    %413 = vmatmul.mubr.f32.gmra.mxu0 %v339
    %v414 = vpop.f32.mrf.mxu0
    %v415 = vadd.f32 0.0, %v414
    %v416 = vpop.f32.mrf.mxu0
    %417 = vmatprep.mubr.f32.mxu0 0.0
    %418 = vmatmul.mubr.f32.gmra.mxu0 %v342
    %v419 = vpop.f32.mrf.mxu0
    %v420 = vadd.f32 0.0, %v419
    %v421 = vpop.f32.mrf.mxu0
    %422 = vdwg.mxu0
    %v423 = vsel %vm327, %v415, -1e+30
    %v424 = vsel %vm328, %v420, -1e+30
    %vm425 = vcmask 130048
    %v426 = vsel %vm425, %v423, -inf
    %427 = vmax.xlane.f32.xlu0 %v426
    %v428 = vpop.xlane.xlu0 %427
    %v429 = vsel %vm425, %v424, -inf
    %430 = vmax.xlane.f32.xlu0 %v429
    %v431 = vpop.xlane.xlu0 %430
    %v432 = vsub.f32 %v423, %v428
    %v433 = vsub.f32 %v424, %v431
    %v434 = vmul.f32 %v432, 1.442695
    %v435 = vpow.pop %v434
    %v436 = vmul.f32 %v433, 1.442695
    %v437 = vpow.pop %v436
    %v438 = vsel %vm425, %v435, 0.0
    %439 = vadd.xlane.f32.xlu0 %v438
    %v440 = vpop.xlane.xlu0 %439
    %v441 = vsel %vm425, %v437, 0.0
    %442 = vadd.xlane.f32.xlu0 %v441
    %v443 = vpop.xlane.xlu0 %442
    %v444 = vrcp.pop %v440
    %v445 = vmul.f32 %v435, %v444
    %v446 = vrcp.pop %v443
    %v447 = vmul.f32 %v437, %v446
    %v449 = vsel %vm425, %v445, 0
    %v452 = vsel %vm425, %v447, 0
    %454 = vmatprep.subr.mxu0 0.0
    %455 = vmatpush1.msra.mxu0 0.0
    %456 = vmatprep.subr.mxu0 0.0
    %457 = vmatpush1.msra.mxu0 0.0
    %458 = vmatprep.subr.mxu0 0.0
    %459 = vmatpush1.msra.mxu0 0.0
    %460 = vmatprep.subr.mxu0 0.0
    %461 = vmatpush1.msra.mxu0 0.0
    %462 = vmatprep.subr.mxu0 0.0
    %463 = vmatpush1.msra.mxu0 0.0
    %464 = vmatprep.subr.mxu0 0.0
    %465 = vmatpush1.msra.mxu0 0.0
    %466 = vmatprep.subr.mxu0 0.0
    %467 = vmatpush1.msra.mxu0 0.0
    %468 = vmatprep.subr.mxu0 0.0
    %469 = vmatpush1.msra.mxu0 0.0
    %470 = vmatprep.subr.mxu0 0.0
    %471 = vmatpush1.msra.mxu0 0.0
    %472 = vmatprep.subr.mxu0 0.0
    %473 = vmatpush1.msra.mxu0 0.0
    %474 = vmatprep.subr.mxu0 0.0
    %475 = vmatpush1.msra.mxu0 0.0
    %476 = vmatprep.subr.mxu0 0.0
    %477 = vmatpush1.msra.mxu0 0.0
    %478 = vmatprep.subr.mxu0 0.0
    %479 = vmatpush1.msra.mxu0 0.0
    %480 = vmatprep.subr.mxu0 0.0
    %481 = vmatpush1.msra.mxu0 0.0
    %482 = vmatprep.subr.mxu0 0.0
    %483 = vmatpush1.msra.mxu0 %v283
    %484 = vmatprep.subr.mxu0 0.0
    %485 = vmatpush1.msra.mxu0 %v278
    %486 = vmatprep.subr.mxu0 0.0
    %487 = vmatpush2.msra.mxu0 0.0
    %488 = vmatprep.subr.mxu0 0.0
    %489 = vmatpush2.msra.mxu0 0.0
    %490 = vmatprep.subr.mxu0 0.0
    %491 = vmatpush2.msra.mxu0 0.0
    %492 = vmatprep.subr.mxu0 0.0
    %493 = vmatpush2.msra.mxu0 0.0
    %494 = vmatprep.subr.mxu0 0.0
    %495 = vmatpush2.msra.mxu0 0.0
    %496 = vmatprep.subr.mxu0 0.0
    %497 = vmatpush2.msra.mxu0 0.0
    %498 = vmatprep.subr.mxu0 0.0
    %499 = vmatpush2.msra.mxu0 0.0
    %500 = vmatprep.subr.mxu0 0.0
    %501 = vmatpush2.msra.mxu0 0.0
    %502 = vmatprep.subr.mxu0 0.0
    %503 = vmatpush2.msra.mxu0 0.0
    %504 = vmatprep.subr.mxu0 0.0
    %505 = vmatpush2.msra.mxu0 0.0
    %506 = vmatprep.subr.mxu0 0.0
    %507 = vmatpush2.msra.mxu0 0.0
    %508 = vmatprep.subr.mxu0 0.0
    %509 = vmatpush2.msra.mxu0 0.0
    %510 = vmatprep.subr.mxu0 0.0
    %511 = vmatpush2.msra.mxu0 0.0
    %512 = vmatprep.subr.mxu0 0.0
    %513 = vmatpush2.msra.mxu0 0.0
    %514 = vmatprep.subr.mxu0 0.0
    %515 = vmatpush2.msra.mxu0 0.0
    %516 = vmatprep.subr.mxu0 0.0
    %517 = vmatpush2.msra.mxu0 0.0
    %518 = vmatprep.mubr.f32.mxu0 0.0
    %519 = vmatmul.mubr.f32.gmra.mxu0 %v449
    %v520 = vpop.f32.mrf.mxu0
    %v521 = vadd.f32 0.0, %v520
    %v522 = vpop.f32.mrf.mxu0
    %523 = vmatprep.mubr.f32.mxu0 0.0
    %524 = vmatmul.mubr.f32.gmra.mxu0 %v452
    %v525 = vpop.f32.mrf.mxu0
    %v526 = vadd.f32 0.0, %v525
    %v527 = vpop.f32.mrf.mxu0
    %528 = vdwg.mxu0
    %529 = vrot.lane.b32.xlu0 %v329, 120
    %v530 = vpop.permute.xlu0 %529
    %531 = vrot.lane.b32.xlu0 %v330, 120
    %v532 = vpop.permute.xlu0 %531
    %533 = vrot.lane.b32.xlu0 %v186, 88
    %v534 = vpop.permute.xlu0 %533
    %535 = vrot.lane.b32.xlu0 %v191, 88
    %v536 = vpop.permute.xlu0 %535
    %v537 = vsel %vm337, %v530, 0
    %v539 = vsel %vm337, %v532, 0
    %v541 = vsel %vm337, %v534, 0
    %v543 = vsel %vm337, %v536, 0
    %545 = vmatprep.subr.mxu0 0.0
    %546 = vmatpush1.xpose.msra.mxu0 0.0
    %547 = vmatprep.subr.mxu0 0.0
    %548 = vmatpush1.xpose.msra.mxu0 0.0
    %549 = vmatprep.subr.mxu0 0.0
    %550 = vmatpush1.xpose.msra.mxu0 0.0
    %551 = vmatprep.subr.mxu0 0.0
    %552 = vmatpush1.xpose.msra.mxu0 0.0
    %553 = vmatprep.subr.mxu0 0.0
    %554 = vmatpush1.xpose.msra.mxu0 0.0
    %555 = vmatprep.subr.mxu0 0.0
    %556 = vmatpush1.xpose.msra.mxu0 0.0
    %557 = vmatprep.subr.mxu0 0.0
    %558 = vmatpush1.xpose.msra.mxu0 0.0
    %559 = vmatprep.subr.mxu0 0.0
    %560 = vmatpush1.xpose.msra.mxu0 0.0
    %561 = vmatprep.subr.mxu0 0.0
    %562 = vmatpush1.xpose.msra.mxu0 0.0
    %563 = vmatprep.subr.mxu0 0.0
    %564 = vmatpush1.xpose.msra.mxu0 0.0
    %565 = vmatprep.subr.mxu0 0.0
    %566 = vmatpush1.xpose.msra.mxu0 0.0
    %567 = vmatprep.subr.mxu0 0.0
    %568 = vmatpush1.xpose.msra.mxu0 0.0
    %569 = vmatprep.subr.mxu0 0.0
    %570 = vmatpush1.xpose.msra.mxu0 0.0
    %571 = vmatprep.subr.mxu0 0.0
    %572 = vmatpush1.xpose.msra.mxu0 0.0
    %573 = vmatprep.subr.mxu0 0.0
    %574 = vmatpush1.xpose.msra.mxu0 %v543
    %575 = vmatprep.subr.mxu0 0.0
    %576 = vmatpush1.xpose.msra.mxu0 %v541
    %577 = vmatprep.subr.mxu0 0.0
    %578 = vmatpush2.xpose.msra.mxu0 0.0
    %579 = vmatprep.subr.mxu0 0.0
    %580 = vmatpush2.xpose.msra.mxu0 0.0
    %581 = vmatprep.subr.mxu0 0.0
    %582 = vmatpush2.xpose.msra.mxu0 0.0
    %583 = vmatprep.subr.mxu0 0.0
    %584 = vmatpush2.xpose.msra.mxu0 0.0
    %585 = vmatprep.subr.mxu0 0.0
    %586 = vmatpush2.xpose.msra.mxu0 0.0
    %587 = vmatprep.subr.mxu0 0.0
    %588 = vmatpush2.xpose.msra.mxu0 0.0
    %589 = vmatprep.subr.mxu0 0.0
    %590 = vmatpush2.xpose.msra.mxu0 0.0
    %591 = vmatprep.subr.mxu0 0.0
    %592 = vmatpush2.xpose.msra.mxu0 0.0
    %593 = vmatprep.subr.mxu0 0.0
    %594 = vmatpush2.xpose.msra.mxu0 0.0
    %595 = vmatprep.subr.mxu0 0.0
    %596 = vmatpush2.xpose.msra.mxu0 0.0
    %597 = vmatprep.subr.mxu0 0.0
    %598 = vmatpush2.xpose.msra.mxu0 0.0
    %599 = vmatprep.subr.mxu0 0.0
    %600 = vmatpush2.xpose.msra.mxu0 0.0
    %601 = vmatprep.subr.mxu0 0.0
    %602 = vmatpush2.xpose.msra.mxu0 0.0
    %603 = vmatprep.subr.mxu0 0.0
    %604 = vmatpush2.xpose.msra.mxu0 0.0
    %605 = vmatprep.subr.mxu0 0.0
    %606 = vmatpush2.xpose.msra.mxu0 0.0
    %607 = vmatprep.subr.mxu0 0.0
    %608 = vmatpush2.xpose.msra.mxu0 0.0
    %609 = vmatprep.mubr.f32.mxu0 0.0
    %610 = vmatmul.mubr.f32.gmra.mxu0 %v537
    %v611 = vpop.f32.mrf.mxu0
    %v612 = vadd.f32 0.0, %v611
    %v613 = vpop.f32.mrf.mxu0
    %614 = vmatprep.mubr.f32.mxu0 0.0
    %615 = vmatmul.mubr.f32.gmra.mxu0 %v539
    %v616 = vpop.f32.mrf.mxu0
    %v617 = vadd.f32 0.0, %v616
    %v618 = vpop.f32.mrf.mxu0
    %619 = vdwg.mxu0
    %v620 = vsel %vm327, %v612, -1e+30
    %v621 = vsel %vm328, %v617, -1e+30
    %v622 = vsel %vm425, %v620, -inf
    %623 = vmax.xlane.f32.xlu0 %v622
    %v624 = vpop.xlane.xlu0 %623
    %v625 = vsel %vm425, %v621, -inf
    %626 = vmax.xlane.f32.xlu0 %v625
    %v627 = vpop.xlane.xlu0 %626
    %v628 = vsub.f32 %v620, %v624
    %v629 = vsub.f32 %v621, %v627
    %v630 = vmul.f32 %v628, 1.442695
    %v631 = vpow.pop %v630
    %v632 = vmul.f32 %v629, 1.442695
    %v633 = vpow.pop %v632
    %v634 = vsel %vm425, %v631, 0.0
    %635 = vadd.xlane.f32.xlu0 %v634
    %v636 = vpop.xlane.xlu0 %635
    %v637 = vsel %vm425, %v633, 0.0
    %638 = vadd.xlane.f32.xlu0 %v637
    %v639 = vpop.xlane.xlu0 %638
    %v640 = vrcp.pop %v636
    %v641 = vmul.f32 %v631, %v640
    %v642 = vrcp.pop %v639
    %v643 = vmul.f32 %v633, %v642
    %646 = vrot.lane.b32.xlu0 %v278, 120
    %v647 = vpop.permute.xlu0 %646
    %648 = vrot.lane.b32.xlu0 %v283, 120
    %v649 = vpop.permute.xlu0 %648
    %v653 = vsel %vm425, %v641, 0
    %v656 = vsel %vm425, %v643, 0
    %658 = vmatprep.subr.mxu0 0.0
    %659 = vmatpush1.msra.mxu0 0.0
    %660 = vmatprep.subr.mxu0 0.0
    %661 = vmatpush1.msra.mxu0 0.0
    %662 = vmatprep.subr.mxu0 0.0
    %663 = vmatpush1.msra.mxu0 0.0
    %664 = vmatprep.subr.mxu0 0.0
    %665 = vmatpush1.msra.mxu0 0.0
    %666 = vmatprep.subr.mxu0 0.0
    %667 = vmatpush1.msra.mxu0 0.0
    %668 = vmatprep.subr.mxu0 0.0
    %669 = vmatpush1.msra.mxu0 0.0
    %670 = vmatprep.subr.mxu0 0.0
    %671 = vmatpush1.msra.mxu0 0.0
    %672 = vmatprep.subr.mxu0 0.0
    %673 = vmatpush1.msra.mxu0 0.0
    %674 = vmatprep.subr.mxu0 0.0
    %675 = vmatpush1.msra.mxu0 0.0
    %676 = vmatprep.subr.mxu0 0.0
    %677 = vmatpush1.msra.mxu0 0.0
    %678 = vmatprep.subr.mxu0 0.0
    %679 = vmatpush1.msra.mxu0 0.0
    %680 = vmatprep.subr.mxu0 0.0
    %681 = vmatpush1.msra.mxu0 0.0
    %682 = vmatprep.subr.mxu0 0.0
    %683 = vmatpush1.msra.mxu0 0.0
    %684 = vmatprep.subr.mxu0 0.0
    %685 = vmatpush1.msra.mxu0 0.0
    %686 = vmatprep.subr.mxu0 0.0
    %687 = vmatpush1.msra.mxu0 %v649
    %688 = vmatprep.subr.mxu0 0.0
    %689 = vmatpush1.msra.mxu0 %v647
    %690 = vmatprep.subr.mxu0 0.0
    %691 = vmatpush2.msra.mxu0 0.0
    %692 = vmatprep.subr.mxu0 0.0
    %693 = vmatpush2.msra.mxu0 0.0
    %694 = vmatprep.subr.mxu0 0.0
    %695 = vmatpush2.msra.mxu0 0.0
    %696 = vmatprep.subr.mxu0 0.0
    %697 = vmatpush2.msra.mxu0 0.0
    %698 = vmatprep.subr.mxu0 0.0
    %699 = vmatpush2.msra.mxu0 0.0
    %700 = vmatprep.subr.mxu0 0.0
    %701 = vmatpush2.msra.mxu0 0.0
    %702 = vmatprep.subr.mxu0 0.0
    %703 = vmatpush2.msra.mxu0 0.0
    %704 = vmatprep.subr.mxu0 0.0
    %705 = vmatpush2.msra.mxu0 0.0
    %706 = vmatprep.subr.mxu0 0.0
    %707 = vmatpush2.msra.mxu0 0.0
    %708 = vmatprep.subr.mxu0 0.0
    %709 = vmatpush2.msra.mxu0 0.0
    %710 = vmatprep.subr.mxu0 0.0
    %711 = vmatpush2.msra.mxu0 0.0
    %712 = vmatprep.subr.mxu0 0.0
    %713 = vmatpush2.msra.mxu0 0.0
    %714 = vmatprep.subr.mxu0 0.0
    %715 = vmatpush2.msra.mxu0 0.0
    %716 = vmatprep.subr.mxu0 0.0
    %717 = vmatpush2.msra.mxu0 0.0
    %718 = vmatprep.subr.mxu0 0.0
    %719 = vmatpush2.msra.mxu0 0.0
    %720 = vmatprep.subr.mxu0 0.0
    %721 = vmatpush2.msra.mxu0 0.0
    %722 = vmatprep.mubr.f32.mxu0 0.0
    %723 = vmatmul.mubr.f32.gmra.mxu0 %v653
    %v724 = vpop.f32.mrf.mxu0
    %v725 = vadd.f32 0.0, %v724
    %v726 = vpop.f32.mrf.mxu0
    %727 = vmatprep.mubr.f32.mxu0 0.0
    %728 = vmatmul.mubr.f32.gmra.mxu0 %v656
    %v729 = vpop.f32.mrf.mxu0
    %v730 = vadd.f32 0.0, %v729
    %v731 = vpop.f32.mrf.mxu0
    %732 = vdwg.mxu0
    %733 = vrot.lane.b32.xlu0 %v329, 112
    %v734 = vpop.permute.xlu0 %733
    %735 = vrot.lane.b32.xlu0 %v330, 112
    %v736 = vpop.permute.xlu0 %735
    %737 = vrot.lane.b32.xlu0 %v186, 80
    %v738 = vpop.permute.xlu0 %737
    %739 = vrot.lane.b32.xlu0 %v191, 80
    %v740 = vpop.permute.xlu0 %739
    %v741 = vsel %vm337, %v734, 0
    %v743 = vsel %vm337, %v736, 0
    %v745 = vsel %vm337, %v738, 0
    %v747 = vsel %vm337, %v740, 0
    %749 = vmatprep.subr.mxu0 0.0
    %750 = vmatpush1.xpose.msra.mxu0 0.0
    %751 = vmatprep.subr.mxu0 0.0
    %752 = vmatpush1.xpose.msra.mxu0 0.0
    %753 = vmatprep.subr.mxu0 0.0
    %754 = vmatpush1.xpose.msra.mxu0 0.0
    %755 = vmatprep.subr.mxu0 0.0
    %756 = vmatpush1.xpose.msra.mxu0 0.0
    %757 = vmatprep.subr.mxu0 0.0
    %758 = vmatpush1.xpose.msra.mxu0 0.0
    %759 = vmatprep.subr.mxu0 0.0
    %760 = vmatpush1.xpose.msra.mxu0 0.0
    %761 = vmatprep.subr.mxu0 0.0
    %762 = vmatpush1.xpose.msra.mxu0 0.0
    %763 = vmatprep.subr.mxu0 0.0
    %764 = vmatpush1.xpose.msra.mxu0 0.0
    %765 = vmatprep.subr.mxu0 0.0
    %766 = vmatpush1.xpose.msra.mxu0 0.0
    %767 = vmatprep.subr.mxu0 0.0
    %768 = vmatpush1.xpose.msra.mxu0 0.0
    %769 = vmatprep.subr.mxu0 0.0
    %770 = vmatpush1.xpose.msra.mxu0 0.0
    %771 = vmatprep.subr.mxu0 0.0
    %772 = vmatpush1.xpose.msra.mxu0 0.0
    %773 = vmatprep.subr.mxu0 0.0
    %774 = vmatpush1.xpose.msra.mxu0 0.0
    %775 = vmatprep.subr.mxu0 0.0
    %776 = vmatpush1.xpose.msra.mxu0 0.0
    %777 = vmatprep.subr.mxu0 0.0
    %778 = vmatpush1.xpose.msra.mxu0 %v747
    %779 = vmatprep.subr.mxu0 0.0
    %780 = vmatpush1.xpose.msra.mxu0 %v745
    %781 = vmatprep.subr.mxu0 0.0
    %782 = vmatpush2.xpose.msra.mxu0 0.0
    %783 = vmatprep.subr.mxu0 0.0
    %784 = vmatpush2.xpose.msra.mxu0 0.0
    %785 = vmatprep.subr.mxu0 0.0
    %786 = vmatpush2.xpose.msra.mxu0 0.0
    %787 = vmatprep.subr.mxu0 0.0
    %788 = vmatpush2.xpose.msra.mxu0 0.0
    %789 = vmatprep.subr.mxu0 0.0
    %790 = vmatpush2.xpose.msra.mxu0 0.0
    %791 = vmatprep.subr.mxu0 0.0
    %792 = vmatpush2.xpose.msra.mxu0 0.0
    %793 = vmatprep.subr.mxu0 0.0
    %794 = vmatpush2.xpose.msra.mxu0 0.0
    %795 = vmatprep.subr.mxu0 0.0
    %796 = vmatpush2.xpose.msra.mxu0 0.0
    %797 = vmatprep.subr.mxu0 0.0
    %798 = vmatpush2.xpose.msra.mxu0 0.0
    %799 = vmatprep.subr.mxu0 0.0
    %800 = vmatpush2.xpose.msra.mxu0 0.0
    %801 = vmatprep.subr.mxu0 0.0
    %802 = vmatpush2.xpose.msra.mxu0 0.0
    %803 = vmatprep.subr.mxu0 0.0
    %804 = vmatpush2.xpose.msra.mxu0 0.0
    %805 = vmatprep.subr.mxu0 0.0
    %806 = vmatpush2.xpose.msra.mxu0 0.0
    %807 = vmatprep.subr.mxu0 0.0
    %808 = vmatpush2.xpose.msra.mxu0 0.0
    %809 = vmatprep.subr.mxu0 0.0
    %810 = vmatpush2.xpose.msra.mxu0 0.0
    %811 = vmatprep.subr.mxu0 0.0
    %812 = vmatpush2.xpose.msra.mxu0 0.0
    %813 = vmatprep.mubr.f32.mxu0 0.0
    %814 = vmatmul.mubr.f32.gmra.mxu0 %v741
    %v815 = vpop.f32.mrf.mxu0
    %v816 = vadd.f32 0.0, %v815
    %v817 = vpop.f32.mrf.mxu0
    %818 = vmatprep.mubr.f32.mxu0 0.0
    %819 = vmatmul.mubr.f32.gmra.mxu0 %v743
    %v820 = vpop.f32.mrf.mxu0
    %v821 = vadd.f32 0.0, %v820
    %v822 = vpop.f32.mrf.mxu0
    %823 = vdwg.mxu0
    %v824 = vsel %vm327, %v816, -1e+30
    %v825 = vsel %vm328, %v821, -1e+30
    %v826 = vsel %vm425, %v824, -inf
    %827 = vmax.xlane.f32.xlu0 %v826
    %v828 = vpop.xlane.xlu0 %827
    %v829 = vsel %vm425, %v825, -inf
    %830 = vmax.xlane.f32.xlu0 %v829
    %v831 = vpop.xlane.xlu0 %830
    %v832 = vsub.f32 %v824, %v828
    %v833 = vsub.f32 %v825, %v831
    %v834 = vmul.f32 %v832, 1.442695
    %v835 = vpow.pop %v834
    %v836 = vmul.f32 %v833, 1.442695
    %v837 = vpow.pop %v836
    %v838 = vsel %vm425, %v835, 0.0
    %839 = vadd.xlane.f32.xlu0 %v838
    %v840 = vpop.xlane.xlu0 %839
    %v841 = vsel %vm425, %v837, 0.0
    %842 = vadd.xlane.f32.xlu0 %v841
    %v843 = vpop.xlane.xlu0 %842
    %v844 = vrcp.pop %v840
    %v845 = vmul.f32 %v835, %v844
    %v846 = vrcp.pop %v843
    %v847 = vmul.f32 %v837, %v846
    %848 = vrot.lane.b32.xlu0 %v278, 112
    %v849 = vpop.permute.xlu0 %848
    %850 = vrot.lane.b32.xlu0 %v283, 112
    %v851 = vpop.permute.xlu0 %850
    %v855 = vsel %vm425, %v845, 0
    %v858 = vsel %vm425, %v847, 0
    %860 = vmatprep.subr.mxu0 0.0
    %861 = vmatpush1.msra.mxu0 0.0
    %862 = vmatprep.subr.mxu0 0.0
    %863 = vmatpush1.msra.mxu0 0.0
    %864 = vmatprep.subr.mxu0 0.0
    %865 = vmatpush1.msra.mxu0 0.0
    %866 = vmatprep.subr.mxu0 0.0
    %867 = vmatpush1.msra.mxu0 0.0
    %868 = vmatprep.subr.mxu0 0.0
    %869 = vmatpush1.msra.mxu0 0.0
    %870 = vmatprep.subr.mxu0 0.0
    %871 = vmatpush1.msra.mxu0 0.0
    %872 = vmatprep.subr.mxu0 0.0
    %873 = vmatpush1.msra.mxu0 0.0
    %874 = vmatprep.subr.mxu0 0.0
    %875 = vmatpush1.msra.mxu0 0.0
    %876 = vmatprep.subr.mxu0 0.0
    %877 = vmatpush1.msra.mxu0 0.0
    %878 = vmatprep.subr.mxu0 0.0
    %879 = vmatpush1.msra.mxu0 0.0
    %880 = vmatprep.subr.mxu0 0.0
    %881 = vmatpush1.msra.mxu0 0.0
    %882 = vmatprep.subr.mxu0 0.0
    %883 = vmatpush1.msra.mxu0 0.0
    %884 = vmatprep.subr.mxu0 0.0
    %885 = vmatpush1.msra.mxu0 0.0
    %886 = vmatprep.subr.mxu0 0.0
    %887 = vmatpush1.msra.mxu0 0.0
    %888 = vmatprep.subr.mxu0 0.0
    %889 = vmatpush1.msra.mxu0 %v851
    %890 = vmatprep.subr.mxu0 0.0
    %891 = vmatpush1.msra.mxu0 %v849
    %892 = vmatprep.subr.mxu0 0.0
    %893 = vmatpush2.msra.mxu0 0.0
    %894 = vmatprep.subr.mxu0 0.0
    %895 = vmatpush2.msra.mxu0 0.0
    %896 = vmatprep.subr.mxu0 0.0
    %897 = vmatpush2.msra.mxu0 0.0
    %898 = vmatprep.subr.mxu0 0.0
    %899 = vmatpush2.msra.mxu0 0.0
    %900 = vmatprep.subr.mxu0 0.0
    %901 = vmatpush2.msra.mxu0 0.0
    %902 = vmatprep.subr.mxu0 0.0
    %903 = vmatpush2.msra.mxu0 0.0
    %904 = vmatprep.subr.mxu0 0.0
    %905 = vmatpush2.msra.mxu0 0.0
    %906 = vmatprep.subr.mxu0 0.0
    %907 = vmatpush2.msra.mxu0 0.0
    %908 = vmatprep.subr.mxu0 0.0
    %909 = vmatpush2.msra.mxu0 0.0
    %910 = vmatprep.subr.mxu0 0.0
    %911 = vmatpush2.msra.mxu0 0.0
    %912 = vmatprep.subr.mxu0 0.0
    %913 = vmatpush2.msra.mxu0 0.0
    %914 = vmatprep.subr.mxu0 0.0
    %915 = vmatpush2.msra.mxu0 0.0
    %916 = vmatprep.subr.mxu0 0.0
    %917 = vmatpush2.msra.mxu0 0.0
    %918 = vmatprep.subr.mxu0 0.0
    %919 = vmatpush2.msra.mxu0 0.0
    %920 = vmatprep.subr.mxu0 0.0
    %921 = vmatpush2.msra.mxu0 0.0
    %922 = vmatprep.subr.mxu0 0.0
    %923 = vmatpush2.msra.mxu0 0.0
    %924 = vmatprep.mubr.f32.mxu0 0.0
    %925 = vmatmul.mubr.f32.gmra.mxu0 %v855
    %v926 = vpop.f32.mrf.mxu0
    %v927 = vadd.f32 0.0, %v926
    %v928 = vpop.f32.mrf.mxu0
    %929 = vmatprep.mubr.f32.mxu0 0.0
    %930 = vmatmul.mubr.f32.gmra.mxu0 %v858
    %v931 = vpop.f32.mrf.mxu0
    %v932 = vadd.f32 0.0, %v931
    %v933 = vpop.f32.mrf.mxu0
    %934 = vdwg.mxu0
    %935 = vrot.lane.b32.xlu0 %v329, 104
    %v936 = vpop.permute.xlu0 %935
    %937 = vrot.lane.b32.xlu0 %v330, 104
    %v938 = vpop.permute.xlu0 %937
    %939 = vrot.lane.b32.xlu0 %v186, 72
    %v940 = vpop.permute.xlu0 %939
    %941 = vrot.lane.b32.xlu0 %v191, 72
    %v942 = vpop.permute.xlu0 %941
    %v943 = vsel %vm337, %v936, 0
    %v945 = vsel %vm337, %v938, 0
    %v947 = vsel %vm337, %v940, 0
    %v949 = vsel %vm337, %v942, 0
    %951 = vmatprep.subr.mxu0 0.0
    %952 = vmatpush1.xpose.msra.mxu0 0.0
    %953 = vmatprep.subr.mxu0 0.0
    %954 = vmatpush1.xpose.msra.mxu0 0.0
    %955 = vmatprep.subr.mxu0 0.0
    %956 = vmatpush1.xpose.msra.mxu0 0.0
    %957 = vmatprep.subr.mxu0 0.0
    %958 = vmatpush1.xpose.msra.mxu0 0.0
    %959 = vmatprep.subr.mxu0 0.0
    %960 = vmatpush1.xpose.msra.mxu0 0.0
    %961 = vmatprep.subr.mxu0 0.0
    %962 = vmatpush1.xpose.msra.mxu0 0.0
    %963 = vmatprep.subr.mxu0 0.0
    %964 = vmatpush1.xpose.msra.mxu0 0.0
    %965 = vmatprep.subr.mxu0 0.0
    %966 = vmatpush1.xpose.msra.mxu0 0.0
    %967 = vmatprep.subr.mxu0 0.0
    %968 = vmatpush1.xpose.msra.mxu0 0.0
    %969 = vmatprep.subr.mxu0 0.0
    %970 = vmatpush1.xpose.msra.mxu0 0.0
    %971 = vmatprep.subr.mxu0 0.0
    %972 = vmatpush1.xpose.msra.mxu0 0.0
    %973 = vmatprep.subr.mxu0 0.0
    %974 = vmatpush1.xpose.msra.mxu0 0.0
    %975 = vmatprep.subr.mxu0 0.0
    %976 = vmatpush1.xpose.msra.mxu0 0.0
    %977 = vmatprep.subr.mxu0 0.0
    %978 = vmatpush1.xpose.msra.mxu0 0.0
    %979 = vmatprep.subr.mxu0 0.0
    %980 = vmatpush1.xpose.msra.mxu0 %v949
    %981 = vmatprep.subr.mxu0 0.0
    %982 = vmatpush1.xpose.msra.mxu0 %v947
    %983 = vmatprep.subr.mxu0 0.0
    %984 = vmatpush2.xpose.msra.mxu0 0.0
    %985 = vmatprep.subr.mxu0 0.0
    %986 = vmatpush2.xpose.msra.mxu0 0.0
    %987 = vmatprep.subr.mxu0 0.0
    %988 = vmatpush2.xpose.msra.mxu0 0.0
    %989 = vmatprep.subr.mxu0 0.0
    %990 = vmatpush2.xpose.msra.mxu0 0.0
    %991 = vmatprep.subr.mxu0 0.0
    %992 = vmatpush2.xpose.msra.mxu0 0.0
    %993 = vmatprep.subr.mxu0 0.0
    %994 = vmatpush2.xpose.msra.mxu0 0.0
    %995 = vmatprep.subr.mxu0 0.0
    %996 = vmatpush2.xpose.msra.mxu0 0.0
    %997 = vmatprep.subr.mxu0 0.0
    %998 = vmatpush2.xpose.msra.mxu0 0.0
    %999 = vmatprep.subr.mxu0 0.0
    %1000 = vmatpush2.xpose.msra.mxu0 0.0
    %1001 = vmatprep.subr.mxu0 0.0
    %1002 = vmatpush2.xpose.msra.mxu0 0.0
    %1003 = vmatprep.subr.mxu0 0.0
    %1004 = vmatpush2.xpose.msra.mxu0 0.0
    %1005 = vmatprep.subr.mxu0 0.0
    %1006 = vmatpush2.xpose.msra.mxu0 0.0
    %1007 = vmatprep.subr.mxu0 0.0
    %1008 = vmatpush2.xpose.msra.mxu0 0.0
    %1009 = vmatprep.subr.mxu0 0.0
    %1010 = vmatpush2.xpose.msra.mxu0 0.0
    %1011 = vmatprep.subr.mxu0 0.0
    %1012 = vmatpush2.xpose.msra.mxu0 0.0
    %1013 = vmatprep.subr.mxu0 0.0
    %1014 = vmatpush2.xpose.msra.mxu0 0.0
    %1015 = vmatprep.mubr.f32.mxu0 0.0
    %1016 = vmatmul.mubr.f32.gmra.mxu0 %v943
    %v1017 = vpop.f32.mrf.mxu0
    %v1018 = vadd.f32 0.0, %v1017
    %v1019 = vpop.f32.mrf.mxu0
    %1020 = vmatprep.mubr.f32.mxu0 0.0
    %1021 = vmatmul.mubr.f32.gmra.mxu0 %v945
    %v1022 = vpop.f32.mrf.mxu0
    %v1023 = vadd.f32 0.0, %v1022
    %v1024 = vpop.f32.mrf.mxu0
    %1025 = vdwg.mxu0
    %v1026 = vsel %vm327, %v1018, -1e+30
    %v1027 = vsel %vm328, %v1023, -1e+30
    %v1028 = vsel %vm425, %v1026, -inf
    %1029 = vmax.xlane.f32.xlu0 %v1028
    %v1030 = vpop.xlane.xlu0 %1029
    %v1031 = vsel %vm425, %v1027, -inf
    %1032 = vmax.xlane.f32.xlu0 %v1031
    %v1033 = vpop.xlane.xlu0 %1032
    %v1034 = vsub.f32 %v1026, %v1030
    %v1035 = vsub.f32 %v1027, %v1033
    %v1036 = vmul.f32 %v1034, 1.442695
    %v1037 = vpow.pop %v1036
    %v1038 = vmul.f32 %v1035, 1.442695
    %v1039 = vpow.pop %v1038
    %v1040 = vsel %vm425, %v1037, 0.0
    %1041 = vadd.xlane.f32.xlu0 %v1040
    %v1042 = vpop.xlane.xlu0 %1041
    %v1043 = vsel %vm425, %v1039, 0.0
    %1044 = vadd.xlane.f32.xlu0 %v1043
    %v1045 = vpop.xlane.xlu0 %1044
    %v1046 = vrcp.pop %v1042
    %v1047 = vmul.f32 %v1037, %v1046
    %v1048 = vrcp.pop %v1045
    %v1049 = vmul.f32 %v1039, %v1048
    %1050 = vrot.lane.b32.xlu0 %v278, 104
    %v1051 = vpop.permute.xlu0 %1050
    %1052 = vrot.lane.b32.xlu0 %v283, 104
    %v1053 = vpop.permute.xlu0 %1052
    %v1057 = vsel %vm425, %v1047, 0
    %v1060 = vsel %vm425, %v1049, 0
    %1062 = vmatprep.subr.mxu0 0.0
    %1063 = vmatpush1.msra.mxu0 0.0
    %1064 = vmatprep.subr.mxu0 0.0
    %1065 = vmatpush1.msra.mxu0 0.0
    %1066 = vmatprep.subr.mxu0 0.0
    %1067 = vmatpush1.msra.mxu0 0.0
    %1068 = vmatprep.subr.mxu0 0.0
    %1069 = vmatpush1.msra.mxu0 0.0
    %1070 = vmatprep.subr.mxu0 0.0
    %1071 = vmatpush1.msra.mxu0 0.0
    %1072 = vmatprep.subr.mxu0 0.0
    %1073 = vmatpush1.msra.mxu0 0.0
    %1074 = vmatprep.subr.mxu0 0.0
    %1075 = vmatpush1.msra.mxu0 0.0
    %1076 = vmatprep.subr.mxu0 0.0
    %1077 = vmatpush1.msra.mxu0 0.0
    %1078 = vmatprep.subr.mxu0 0.0
    %1079 = vmatpush1.msra.mxu0 0.0
    %1080 = vmatprep.subr.mxu0 0.0
    %1081 = vmatpush1.msra.mxu0 0.0
    %1082 = vmatprep.subr.mxu0 0.0
    %1083 = vmatpush1.msra.mxu0 0.0
    %1084 = vmatprep.subr.mxu0 0.0
    %1085 = vmatpush1.msra.mxu0 0.0
    %1086 = vmatprep.subr.mxu0 0.0
    %1087 = vmatpush1.msra.mxu0 0.0
    %1088 = vmatprep.subr.mxu0 0.0
    %1089 = vmatpush1.msra.mxu0 0.0
    %1090 = vmatprep.subr.mxu0 0.0
    %1091 = vmatpush1.msra.mxu0 %v1053
    %1092 = vmatprep.subr.mxu0 0.0
    %1093 = vmatpush1.msra.mxu0 %v1051
    %1094 = vmatprep.subr.mxu0 0.0
    %1095 = vmatpush2.msra.mxu0 0.0
    %1096 = vmatprep.subr.mxu0 0.0
    %1097 = vmatpush2.msra.mxu0 0.0
    %1098 = vmatprep.subr.mxu0 0.0
    %1099 = vmatpush2.msra.mxu0 0.0
    %1100 = vmatprep.subr.mxu0 0.0
    %1101 = vmatpush2.msra.mxu0 0.0
    %1102 = vmatprep.subr.mxu0 0.0
    %1103 = vmatpush2.msra.mxu0 0.0
    %1104 = vmatprep.subr.mxu0 0.0
    %1105 = vmatpush2.msra.mxu0 0.0
    %1106 = vmatprep.subr.mxu0 0.0
    %1107 = vmatpush2.msra.mxu0 0.0
    %1108 = vmatprep.subr.mxu0 0.0
    %1109 = vmatpush2.msra.mxu0 0.0
    %1110 = vmatprep.subr.mxu0 0.0
    %1111 = vmatpush2.msra.mxu0 0.0
    %1112 = vmatprep.subr.mxu0 0.0
    %1113 = vmatpush2.msra.mxu0 0.0
    %1114 = vmatprep.subr.mxu0 0.0
    %1115 = vmatpush2.msra.mxu0 0.0
    %1116 = vmatprep.subr.mxu0 0.0
    %1117 = vmatpush2.msra.mxu0 0.0
    %1118 = vmatprep.subr.mxu0 0.0
    %1119 = vmatpush2.msra.mxu0 0.0
    %1120 = vmatprep.subr.mxu0 0.0
    %1121 = vmatpush2.msra.mxu0 0.0
    %1122 = vmatprep.subr.mxu0 0.0
    %1123 = vmatpush2.msra.mxu0 0.0
    %1124 = vmatprep.subr.mxu0 0.0
    %1125 = vmatpush2.msra.mxu0 0.0
    %1126 = vmatprep.mubr.f32.mxu0 0.0
    %1127 = vmatmul.mubr.f32.gmra.mxu0 %v1057
    %v1128 = vpop.f32.mrf.mxu0
    %v1129 = vadd.f32 0.0, %v1128
    %v1130 = vpop.f32.mrf.mxu0
    %1131 = vmatprep.mubr.f32.mxu0 0.0
    %1132 = vmatmul.mubr.f32.gmra.mxu0 %v1060
    %v1133 = vpop.f32.mrf.mxu0
    %v1134 = vadd.f32 0.0, %v1133
    %v1135 = vpop.f32.mrf.mxu0
    %1136 = vdwg.mxu0
    %1139 = vrot.lane.b32.xlu0 %v725, 8
    %v1140 = vpop.permute.xlu0 %1139
    %1141 = vrot.lane.b32.xlu0 %v730, 8
    %v1142 = vpop.permute.xlu0 %1141
    %1147 = vrot.lane.b32.xlu0 %v927, 16
    %v1148 = vpop.permute.xlu0 %1147
    %1149 = vrot.lane.b32.xlu0 %v932, 16
    %v1150 = vpop.permute.xlu0 %1149
    %1155 = vrot.lane.b32.xlu0 %v1129, 24
    %v1156 = vpop.permute.xlu0 %1155
    %1157 = vrot.lane.b32.xlu0 %v1134, 24
    %v1158 = vpop.permute.xlu0 %1157
    %v1161 = vsel %vm337, %v521, %v1140
    %v1162 = vsel %vm337, %v526, %v1142
    %v1163 = vsel %vm425, %v1161, %v1148
    %v1164 = vsel %vm425, %v1162, %v1150
    %vm1165 = vcmask 195584
    %v1166 = vsel %vm1165, %v1163, %v1156
    %v1167 = vsel %vm1165, %v1164, %v1158
    %v1168 = vld [vmem:[%s4] sm:$0xff]
    %v1169 = vld [vmem:[%s4 + $0x8] sm:$0xff]
    %v1170 = vld [vmem:[%s4 + $0x10] sm:$0xff]
    %v1171 = vld [vmem:[%s4 + $0x18] sm:$0xff]
    %v1172 = vld [vmem:[%s9] sm:$0x1]
    %v1174 = vlaneseq
    %v1175 = vshrl.u32 %v1174, 7
    %v1176 = vsub.s32 0, %v1175
    %v1177 = vrot.slane %v1172, %v1176
    %v1180 = vsel %vm112, %v1166, 0
    %v1183 = vsel %vm112, %v1167, 0
    %1185 = vmatprep.subr.mxu0 0.0
    %1186 = vmatpush1.msra.mxu0 0.0
    %1187 = vmatprep.subr.mxu0 0.0
    %1188 = vmatpush1.msra.mxu0 0.0
    %1189 = vmatprep.subr.mxu0 0.0
    %1190 = vmatpush1.msra.mxu0 0.0
    %1191 = vmatprep.subr.mxu0 0.0
    %1192 = vmatpush1.msra.mxu0 0.0
    %1193 = vmatprep.subr.mxu0 0.0
    %1194 = vmatpush1.msra.mxu0 0.0
    %1195 = vmatprep.subr.mxu0 0.0
    %1196 = vmatpush1.msra.mxu0 0.0
    %1197 = vmatprep.subr.mxu0 0.0
    %1198 = vmatpush1.msra.mxu0 0.0
    %1199 = vmatprep.subr.mxu0 0.0
    %1200 = vmatpush1.msra.mxu0 0.0
    %1201 = vmatprep.subr.mxu0 0.0
    %1202 = vmatpush1.msra.mxu0 0.0
    %1203 = vmatprep.subr.mxu0 0.0
    %1204 = vmatpush1.msra.mxu0 0.0
    %1205 = vmatprep.subr.mxu0 0.0
    %1206 = vmatpush1.msra.mxu0 0.0
    %1207 = vmatprep.subr.mxu0 0.0
    %1208 = vmatpush1.msra.mxu0 0.0
    %1209 = vmatprep.subr.mxu0 0.0
    %1210 = vmatpush1.msra.mxu0 %v1171
    %1211 = vmatprep.subr.mxu0 0.0
    %1212 = vmatpush1.msra.mxu0 %v1170
    %1213 = vmatprep.subr.mxu0 0.0
    %1214 = vmatpush1.msra.mxu0 %v1169
    %1215 = vmatprep.subr.mxu0 0.0
    %1216 = vmatpush1.msra.mxu0 %v1168
    %1217 = vmatprep.subr.mxu0 0.0
    %1218 = vmatpush2.msra.mxu0 0.0
    %1219 = vmatprep.subr.mxu0 0.0
    %1220 = vmatpush2.msra.mxu0 0.0
    %1221 = vmatprep.subr.mxu0 0.0
    %1222 = vmatpush2.msra.mxu0 0.0
    %1223 = vmatprep.subr.mxu0 0.0
    %1224 = vmatpush2.msra.mxu0 0.0
    %1225 = vmatprep.subr.mxu0 0.0
    %1226 = vmatpush2.msra.mxu0 0.0
    %1227 = vmatprep.subr.mxu0 0.0
    %1228 = vmatpush2.msra.mxu0 0.0
    %1229 = vmatprep.subr.mxu0 0.0
    %1230 = vmatpush2.msra.mxu0 0.0
    %1231 = vmatprep.subr.mxu0 0.0
    %1232 = vmatpush2.msra.mxu0 0.0
    %1233 = vmatprep.subr.mxu0 0.0
    %1234 = vmatpush2.msra.mxu0 0.0
    %1235 = vmatprep.subr.mxu0 0.0
    %1236 = vmatpush2.msra.mxu0 0.0
    %1237 = vmatprep.subr.mxu0 0.0
    %1238 = vmatpush2.msra.mxu0 0.0
    %1239 = vmatprep.subr.mxu0 0.0
    %1240 = vmatpush2.msra.mxu0 0.0
    %1241 = vmatprep.subr.mxu0 0.0
    %1242 = vmatpush2.msra.mxu0 0.0
    %1243 = vmatprep.subr.mxu0 0.0
    %1244 = vmatpush2.msra.mxu0 0.0
    %1245 = vmatprep.subr.mxu0 0.0
    %1246 = vmatpush2.msra.mxu0 0.0
    %1247 = vmatprep.subr.mxu0 0.0
    %1248 = vmatpush2.msra.mxu0 0.0
    %1249 = vmatprep.mubr.f32.mxu0 0.0
    %1250 = vmatmul.mubr.f32.gmra.mxu0 %v1180
    %v1251 = vpop.f32.mrf.mxu0
    %v1252 = vadd.f32 %v1177, %v1251
    %v1253 = vpop.f32.mrf.mxu0
    %1254 = vmatprep.mubr.f32.mxu0 0.0
    %1255 = vmatmul.mubr.f32.gmra.mxu0 %v1183
    %v1256 = vpop.f32.mrf.mxu0
    %v1257 = vadd.f32 %v1177, %v1256
    %v1258 = vpop.f32.mrf.mxu0
    %1259 = vdwg.mxu0
    %v1260 = vadd.f32 %v95, %v1252
    %v1261 = vadd.f32 %v96, %v1257
    %v1262 = vsel %vm112, %v1260, 0.0
    %1263 = vadd.xlane.f32.xlu0 %v1262
    %v1264 = vpop.xlane.xlu0 %1263
    %v1265 = vsel %vm112, %v1261, 0.0
    %1266 = vadd.xlane.f32.xlu0 %v1265
    %v1267 = vpop.xlane.xlu0 %1266
    %v1268 = vrcp.pop 32.0
    %v1269 = vmul.f32 %v1264, %v1268
    %v1270 = vmul.f32 %v1267, %v1268
    %v1271 = vsub.f32 %v1260, %v1269
    %v1272 = vsub.f32 %v1261, %v1270
    %v1273 = vmul.f32 %v1271, %v1271
    %v1274 = vmul.f32 %v1272, %v1272
    %v1275 = vsel %vm112, %v1273, 0.0
    %1276 = vadd.xlane.f32.xlu0 %v1275
    %v1277 = vpop.xlane.xlu0 %1276
    %v1278 = vsel %vm112, %v1274, 0.0
    %1279 = vadd.xlane.f32.xlu0 %v1278
    %v1280 = vpop.xlane.xlu0 %1279
    %v1281 = vmul.f32 %v1277, %v1268
    %v1282 = vmul.f32 %v1280, %v1268
    %v1283 = vadd.f32 %v1281, 1e-05
    %v1284 = vadd.f32 %v1282, 1e-05
    %v1285 = vrsqrt.pop %v1283
    %v1286 = vrsqrt.pop %v1284
    %v1287 = vmul.f32 %v1271, %v1285
    %v1288 = vmul.f32 %v1272, %v1286
    %v1289 = vld [vmem:[%s12] sm:$0x1]
    %v1291 = vlaneseq
    %v1292 = vshrl.u32 %v1291, 7
    %v1293 = vsub.s32 0, %v1292
    %v1294 = vrot.slane %v1289, %v1293
    %v1296 = vmul.f32 %v1287, %v1294
    %v1297 = vmul.f32 %v1288, %v1294
    %v1298 = vld [vmem:[%s13] sm:$0x1]
    %v1300 = vlaneseq
    %v1301 = vshrl.u32 %v1300, 7
    %v1302 = vsub.s32 0, %v1301
    %v1303 = vrot.slane %v1298, %v1302
    %v1305 = vadd.f32 %v1296, %v1303
    %v1306 = vadd.f32 %v1297, %v1303
    %v1307 = vld [vmem:[#allocation7] sm:$0xff]
    %v1308 = vld [vmem:[#allocation7 + $0x8] sm:$0xff]
    %v1309 = vld [vmem:[#allocation7 + $0x10] sm:$0xff]
    %v1310 = vld [vmem:[#allocation7 + $0x18] sm:$0xff]
    %v1311 = vld [vmem:[%s10] sm:$0x1]
    %v1313 = vlaneseq
    %v1314 = vshrl.u32 %v1313, 7
    %v1315 = vsub.s32 0, %v1314
    %v1316 = vrot.slane %v1311, %v1315
    %v1319 = vsel %vm112, %v1305, 0
    %v1322 = vsel %vm112, %v1306, 0
    %1324 = vmatprep.subr.mxu0 0.0
    %1325 = vmatpush1.msra.mxu0 0.0
    %1326 = vmatprep.subr.mxu0 0.0
    %1327 = vmatpush1.msra.mxu0 0.0
    %1328 = vmatprep.subr.mxu0 0.0
    %1329 = vmatpush1.msra.mxu0 0.0
    %1330 = vmatprep.subr.mxu0 0.0
    %1331 = vmatpush1.msra.mxu0 0.0
    %1332 = vmatprep.subr.mxu0 0.0
    %1333 = vmatpush1.msra.mxu0 0.0
    %1334 = vmatprep.subr.mxu0 0.0
    %1335 = vmatpush1.msra.mxu0 0.0
    %1336 = vmatprep.subr.mxu0 0.0
    %1337 = vmatpush1.msra.mxu0 0.0
    %1338 = vmatprep.subr.mxu0 0.0
    %1339 = vmatpush1.msra.mxu0 0.0
    %1340 = vmatprep.subr.mxu0 0.0
    %1341 = vmatpush1.msra.mxu0 0.0
    %1342 = vmatprep.subr.mxu0 0.0
    %1343 = vmatpush1.msra.mxu0 0.0
    %1344 = vmatprep.subr.mxu0 0.0
    %1345 = vmatpush1.msra.mxu0 0.0
    %1346 = vmatprep.subr.mxu0 0.0
    %1347 = vmatpush1.msra.mxu0 0.0
    %1348 = vmatprep.subr.mxu0 0.0
    %1349 = vmatpush1.msra.mxu0 %v1310
    %1350 = vmatprep.subr.mxu0 0.0
    %1351 = vmatpush1.msra.mxu0 %v1309
    %1352 = vmatprep.subr.mxu0 0.0
    %1353 = vmatpush1.msra.mxu0 %v1308
    %1354 = vmatprep.subr.mxu0 0.0
    %1355 = vmatpush1.msra.mxu0 %v1307
    %1356 = vmatprep.subr.mxu0 0.0
    %1357 = vmatpush2.msra.mxu0 0.0
    %1358 = vmatprep.subr.mxu0 0.0
    %1359 = vmatpush2.msra.mxu0 0.0
    %1360 = vmatprep.subr.mxu0 0.0
    %1361 = vmatpush2.msra.mxu0 0.0
    %1362 = vmatprep.subr.mxu0 0.0
    %1363 = vmatpush2.msra.mxu0 0.0
    %1364 = vmatprep.subr.mxu0 0.0
    %1365 = vmatpush2.msra.mxu0 0.0
    %1366 = vmatprep.subr.mxu0 0.0
    %1367 = vmatpush2.msra.mxu0 0.0
    %1368 = vmatprep.subr.mxu0 0.0
    %1369 = vmatpush2.msra.mxu0 0.0
    %1370 = vmatprep.subr.mxu0 0.0
    %1371 = vmatpush2.msra.mxu0 0.0
    %1372 = vmatprep.subr.mxu0 0.0
    %1373 = vmatpush2.msra.mxu0 0.0
    %1374 = vmatprep.subr.mxu0 0.0
    %1375 = vmatpush2.msra.mxu0 0.0
    %1376 = vmatprep.subr.mxu0 0.0
    %1377 = vmatpush2.msra.mxu0 0.0
    %1378 = vmatprep.subr.mxu0 0.0
    %1379 = vmatpush2.msra.mxu0 0.0
    %1380 = vmatprep.subr.mxu0 0.0
    %1381 = vmatpush2.msra.mxu0 0.0
    %1382 = vmatprep.subr.mxu0 0.0
    %1383 = vmatpush2.msra.mxu0 0.0
    %1384 = vmatprep.subr.mxu0 0.0
    %1385 = vmatpush2.msra.mxu0 0.0
    %1386 = vmatprep.subr.mxu0 0.0
    %1387 = vmatpush2.msra.mxu0 0.0
    %1388 = vmatprep.mubr.f32.mxu0 0.0
    %1389 = vmatmul.mubr.f32.gmra.mxu0 %v1319
    %v1390 = vpop.f32.mrf.mxu0
    %v1391 = vadd.f32 %v1316, %v1390
    %v1392 = vpop.f32.mrf.mxu0
    %1393 = vmatprep.mubr.f32.mxu0 0.0
    %1394 = vmatmul.mubr.f32.gmra.mxu0 %v1322
    %v1395 = vpop.f32.mrf.mxu0
    %v1396 = vadd.f32 %v1316, %v1395
    %v1397 = vpop.f32.mrf.mxu0
    %1398 = vdwg.mxu0
    %v1399 = vmax.f32 %v1391, 0.0
    %v1400 = vmax.f32 %v1396, 0.0
    %v1401 = vld [vmem:[%s6] sm:$0xff]
    %v1402 = vld [vmem:[%s6 + $0x8] sm:$0xff]
    %v1403 = vld [vmem:[%s6 + $0x10] sm:$0xff]
    %v1404 = vld [vmem:[%s6 + $0x18] sm:$0xff]
    %v1405 = vld [vmem:[%s6 + $0x20] sm:$0xff]
    %v1406 = vld [vmem:[%s6 + $0x28] sm:$0xff]
    %v1407 = vld [vmem:[%s6 + $0x30] sm:$0xff]
    %v1408 = vld [vmem:[%s6 + $0x38] sm:$0xff]
    %v1409 = vld [vmem:[%s11] sm:$0x1]
    %v1411 = vlaneseq
    %v1412 = vshrl.u32 %v1411, 7
    %v1413 = vsub.s32 0, %v1412
    %v1414 = vrot.slane %v1409, %v1413
    %vm1416 = vcmask 523264
    %v1418 = vsel %vm1416, %v1399, 0
    %v1421 = vsel %vm1416, %v1400, 0
    %1423 = vmatprep.subr.mxu0 0.0
    %1424 = vmatpush1.msra.mxu0 0.0
    %1425 = vmatprep.subr.mxu0 0.0
    %1426 = vmatpush1.msra.mxu0 0.0
    %1427 = vmatprep.subr.mxu0 0.0
    %1428 = vmatpush1.msra.mxu0 0.0
    %1429 = vmatprep.subr.mxu0 0.0
    %1430 = vmatpush1.msra.mxu0 0.0
    %1431 = vmatprep.subr.mxu0 0.0
    %1432 = vmatpush1.msra.mxu0 0.0
    %1433 = vmatprep.subr.mxu0 0.0
    %1434 = vmatpush1.msra.mxu0 0.0
    %1435 = vmatprep.subr.mxu0 0.0
    %1436 = vmatpush1.msra.mxu0 0.0
    %1437 = vmatprep.subr.mxu0 0.0
    %1438 = vmatpush1.msra.mxu0 0.0
    %1439 = vmatprep.subr.mxu0 0.0
    %1440 = vmatpush1.msra.mxu0 %v1408
    %1441 = vmatprep.subr.mxu0 0.0
    %1442 = vmatpush1.msra.mxu0 %v1407
    %1443 = vmatprep.subr.mxu0 0.0
    %1444 = vmatpush1.msra.mxu0 %v1406
    %1445 = vmatprep.subr.mxu0 0.0
    %1446 = vmatpush1.msra.mxu0 %v1405
    %1447 = vmatprep.subr.mxu0 0.0
    %1448 = vmatpush1.msra.mxu0 %v1404
    %1449 = vmatprep.subr.mxu0 0.0
    %1450 = vmatpush1.msra.mxu0 %v1403
    %1451 = vmatprep.subr.mxu0 0.0
    %1452 = vmatpush1.msra.mxu0 %v1402
    %1453 = vmatprep.subr.mxu0 0.0
    %1454 = vmatpush1.msra.mxu0 %v1401
    %1455 = vmatprep.subr.mxu0 0.0
    %1456 = vmatpush2.msra.mxu0 0.0
    %1457 = vmatprep.subr.mxu0 0.0
    %1458 = vmatpush2.msra.mxu0 0.0
    %1459 = vmatprep.subr.mxu0 0.0
    %1460 = vmatpush2.msra.mxu0 0.0
    %1461 = vmatprep.subr.mxu0 0.0
    %1462 = vmatpush2.msra.mxu0 0.0
    %1463 = vmatprep.subr.mxu0 0.0
    %1464 = vmatpush2.msra.mxu0 0.0
    %1465 = vmatprep.subr.mxu0 0.0
    %1466 = vmatpush2.msra.mxu0 0.0
    %1467 = vmatprep.subr.mxu0 0.0
    %1468 = vmatpush2.msra.mxu0 0.0
    %1469 = vmatprep.subr.mxu0 0.0
    %1470 = vmatpush2.msra.mxu0 0.0
    %1471 = vmatprep.subr.mxu0 0.0
    %1472 = vmatpush2.msra.mxu0 0.0
    %1473 = vmatprep.subr.mxu0 0.0
    %1474 = vmatpush2.msra.mxu0 0.0
    %1475 = vmatprep.subr.mxu0 0.0
    %1476 = vmatpush2.msra.mxu0 0.0
    %1477 = vmatprep.subr.mxu0 0.0
    %1478 = vmatpush2.msra.mxu0 0.0
    %1479 = vmatprep.subr.mxu0 0.0
    %1480 = vmatpush2.msra.mxu0 0.0
    %1481 = vmatprep.subr.mxu0 0.0
    %1482 = vmatpush2.msra.mxu0 0.0
    %1483 = vmatprep.subr.mxu0 0.0
    %1484 = vmatpush2.msra.mxu0 0.0
    %1485 = vmatprep.subr.mxu0 0.0
    %1486 = vmatpush2.msra.mxu0 0.0
    %1487 = vmatprep.mubr.f32.mxu0 0.0
    %1488 = vmatmul.mubr.f32.gmra.mxu0 %v1418
    %v1489 = vpop.f32.mrf.mxu0
    %v1490 = vadd.f32 %v1414, %v1489
    %v1491 = vpop.f32.mrf.mxu0
    %1492 = vmatprep.mubr.f32.mxu0 0.0
    %1493 = vmatmul.mubr.f32.gmra.mxu0 %v1421
    %v1494 = vpop.f32.mrf.mxu0
    %v1495 = vadd.f32 %v1414, %v1494
    %v1496 = vpop.f32.mrf.mxu0
    %1497 = vdwg.mxu0
    %v1498 = vadd.f32 %v1305, %v1490
    %v1499 = vadd.f32 %v1306, %v1495
    %v1500 = vsel %vm112, %v1498, 0.0
    %1501 = vadd.xlane.f32.xlu0 %v1500
    %v1502 = vpop.xlane.xlu0 %1501
    %v1503 = vsel %vm112, %v1499, 0.0
    %1504 = vadd.xlane.f32.xlu0 %v1503
    %v1505 = vpop.xlane.xlu0 %1504
    %v1506 = vmul.f32 %v1502, %v1268
    %v1507 = vmul.f32 %v1505, %v1268
    %v1508 = vsub.f32 %v1498, %v1506
    %v1509 = vsub.f32 %v1499, %v1507
    %v1510 = vmul.f32 %v1508, %v1508
    %v1511 = vmul.f32 %v1509, %v1509
    %v1512 = vsel %vm112, %v1510, 0.0
    %1513 = vadd.xlane.f32.xlu0 %v1512
    %v1514 = vpop.xlane.xlu0 %1513
    %v1515 = vsel %vm112, %v1511, 0.0
    %1516 = vadd.xlane.f32.xlu0 %v1515
    %v1517 = vpop.xlane.xlu0 %1516
    %v1518 = vmul.f32 %v1514, %v1268
    %v1519 = vmul.f32 %v1517, %v1268
    %v1520 = vadd.f32 %v1518, 1e-05
    %v1521 = vadd.f32 %v1519, 1e-05
    %v1522 = vrsqrt.pop %v1520
    %v1523 = vrsqrt.pop %v1521
    %v1524 = vmul.f32 %v1508, %v1522
    %v1525 = vmul.f32 %v1509, %v1523
    %v1526 = vld [vmem:[%s14] sm:$0x1]
    %v1528 = vlaneseq
    %v1529 = vshrl.u32 %v1528, 7
    %v1530 = vsub.s32 0, %v1529
    %v1531 = vrot.slane %v1526, %v1530
    %v1533 = vmul.f32 %v1524, %v1531
    %v1534 = vmul.f32 %v1525, %v1531
    %v1535 = vld [vmem:[%s15] sm:$0x1]
    %v1537 = vlaneseq
    %v1538 = vshrl.u32 %v1537, 7
    %v1539 = vsub.s32 0, %v1538
    %v1540 = vrot.slane %v1535, %v1539
    %v1542 = vadd.f32 %v1533, %v1540
    %v1543 = vadd.f32 %v1534, %v1540
    %1544 = vst.msk [vmem:[#allocation8] sm:$0xff] %vm112, %v1542
    %1545 = vst.msk [vmem:[#allocation8 + $0x8] sm:$0xff] %vm112, %v1543
    // Predicated region
    $region78: #{tpu_custom_call.1} parent=1 // pred_check
      _
    $region79: #{tpu_custom_call.1} parent=1 // pred_check_branch
      %1547 = sbr.rel (0) target = $region81
    $region80: #{tpu_custom_call.1} parent=1 // pred_region
      %s1549 = ssub.s32 256, 256
      %1550 = vsyncadd [#allocation4], %s1549
      %s1551 = sshll.u32 [#allocation8], 4
      %s1552 = int_to_ptr.vmem [resolvable:$true] %s1551
      %1557 = dma.vmem_to_hbm [thread:$0]  %s1552, 256, %s16, [#allocation4], 128, 128, 8
    $region81: #{tpu_custom_call.1} parent=1 // pred_fallthru
      _
    // Predicated region
    $region82: #{tpu_custom_call.1} parent=1 // pred_check
      _
    $region83: #{tpu_custom_call.1} parent=1 // pred_check_branch
      %1559 = sbr.rel (0) target = $region85
    $region84: #{tpu_custom_call.1} parent=1 // pred_region
      %1560 = dma.done [#allocation4], 256
    $region85: #{tpu_custom_call.1} parent=1 // pred_fallthru
      _
    %1561 = vsyncpa [#allocation3], 1
    %1562 = vsyncpa [#allocation6], 1
    %1563 = vsyncpa [#allocation4], 1

</llo_original>
